<compile_context>
chip_gen: v7x
topology: tpu7x:2x2x1
jax: 0.10.0
libtpu: 0.0.40
codegen_flags: <defaults>
</compile_context>

<pallas_src>
import jax
import jax.numpy as jnp
from jax import lax
from jax.experimental import pallas as pl
from jax.experimental.pallas import tpu as pltpu

# ---- problem sizes (match the PyTorch module) --------------------------
INPUT_SIZE = 1
HIDDEN_SIZE = 50
OUTPUT_SIZE = 1
BATCH = 2
SEQ = 8

# ---- padded tile sizes --------------------------------------------------
B_PAD = 8      # sublane multiple
H_PAD = 128    # lane multiple (>= 50)
O_PAD = 128    # lane multiple (>= 1), keeps the output store lane-dense

# PyTorch stacks gates as [i, f, g, o]; kernel packs [i, f, o, g].
_GATE_PERM = (0, 1, 3, 2)


def lstm_kernel(x_ref, w_ih_ref, w_hh_ref, b_ref, w_fc_ref, b_fc_ref, out_ref):
    """Single-program kernel: full LSTM recurrence + final linear head.

    x_ref    : (T, B_PAD, 1)  f32   per-timestep scalar inputs
    w_ih_ref : (1, 4*H_PAD)   f32   W_ih^T row (input_size == 1), gates [i,f,o,g]
    w_hh_ref : (H_PAD, 4*H_PAD) bf16  W_hh^T, gate-blocked columns [i,f,o,g]
    b_ref    : (1, 4*H_PAD)   f32   b_ih + b_hh
    w_fc_ref : (1, H_PAD)     f32   FC weight row
    b_fc_ref : (1, 1)         f32   FC bias (SMEM scalar)
    out_ref  : (B_PAD, O_PAD) f32
    """
    seq = x_ref.shape[0]
    H = H_PAD

    w_row = w_ih_ref[...]            # (1, 4*H_PAD) f32
    b_row = b_ref[...]               # (1, 4*H_PAD) f32
    w_hh = w_hh_ref[...]             # (H_PAD, 4*H_PAD) bf16

    h0 = jnp.zeros((B_PAD, H_PAD), jnp.float32)
    c0 = jnp.zeros((B_PAD, H_PAD), jnp.float32)

    def step(t, carry):
        h, c = carry
        # Input projection: pure VPU broadcast, co-issues under the MXU work.
        gates_x = x_ref[t] * w_row + b_row                       # (B_PAD, 4*H_PAD)
        # Recurrent matmul: bf16 inputs, f32 accumulation (single MXU pass).
        gates = (
            jnp.dot(h.astype(jnp.bfloat16), w_hh,
                    preferred_element_type=jnp.float32)
            + gates_x
        )                                                         # (B_PAD, 4*H_PAD)
        sig = jax.nn.sigmoid(gates[:, :3 * H])                    # [i | f | o] in one pass
        g_g = jnp.tanh(gates[:, 3 * H:])                          # g
        i_g = sig[:, 0 * H:1 * H]
        f_g = sig[:, 1 * H:2 * H]
        o_g = sig[:, 2 * H:3 * H]
        c_new = f_g * c + i_g * g_g
        h_new = o_g * jnp.tanh(c_new)
        return h_new, c_new

    h, _ = lax.fori_loop(0, seq, step, (h0, c0), unroll=True)

    # FC head (off the recurrence chain): VPU multiply + lane reduction.
    logit = jnp.sum(h * w_fc_ref[...], axis=-1, keepdims=True) + b_fc_ref[0, 0]
    out_ref[...] = jnp.broadcast_to(logit, out_ref.shape)         # lane-dense store


def prepare_params(w_ih, w_hh, b_ih, b_hh, w_fc, b_fc):
    """One-time repacking of PyTorch nn.LSTM / nn.Linear weights.

    Run at model-load time; the jitted forward only takes packed tensors.
    """
    H, F = HIDDEN_SIZE, INPUT_SIZE
    perm = jnp.array(_GATE_PERM)

    w_ih_g = w_ih.reshape(4, H, F)[perm]                 # (4, H, 1) [i,f,o,g]
    w_hh_g = w_hh.reshape(4, H, H)[perm]                 # (4, H, H)
    b_g = (b_ih + b_hh).reshape(4, H)[perm]              # (4, H)

    # W_ih^T packed as a single padded f32 row (input_size == 1).
    w_ih_row = (jnp.zeros((4, H_PAD), jnp.float32)
                .at[:, :H].set(w_ih_g[:, :, 0])
                .reshape(1, 4 * H_PAD))
    # W_hh^T with gate-blocked columns, stored in bf16 (f32 accumulation in-kernel).
    w_hh_t = (jnp.zeros((4, H_PAD, H_PAD), jnp.float32)
              .at[:, :H, :H].set(w_hh_g)
              .transpose(2, 0, 1)
              .reshape(H_PAD, 4 * H_PAD)
              .astype(jnp.bfloat16))
    b_row = (jnp.zeros((4, H_PAD), jnp.float32)
             .at[:, :H].set(b_g)
             .reshape(1, 4 * H_PAD))

    # FC head as a single padded row + SMEM scalar bias (output_size == 1).
    w_fc_row = jnp.zeros((1, H_PAD), jnp.float32).at[0, :H].set(w_fc[0, :])
    b_fc_p = jnp.reshape(b_fc.astype(jnp.float32), (1, 1))
    return w_ih_row, w_hh_t, b_row, w_fc_row, b_fc_p


@jax.jit
def stock_predictor_forward(x, w_ih_row, w_hh_t, b_row, w_fc_row, b_fc_p):
    """x: (B, T, 1) float32 -> (B, 1) float32, matching the PyTorch forward."""
    B, T, _ = x.shape

    # Tiny per-call relayout of the activations only: (B, T, 1) -> (T, B_PAD, 1).
    x_p = (jnp.zeros((T, B_PAD, 1), jnp.float32)
           .at[:, :B, :].set(jnp.transpose(x, (1, 0, 2))))

    vmem = pl.BlockSpec(memory_space=pltpu.MemorySpace.VMEM)
    smem = pl.BlockSpec(memory_space=pltpu.MemorySpace.SMEM)
    out_pad = pl.pallas_call(
        lstm_kernel,
        out_shape=jax.ShapeDtypeStruct((B_PAD, O_PAD), jnp.float32),
        in_specs=[vmem, vmem, vmem, vmem, vmem, smem],
        out_specs=vmem,
    )(x_p, w_ih_row, w_hh_t, b_row, w_fc_row, b_fc_p)

    return out_pad[:B, :OUTPUT_SIZE]


def _reference_forward(x, w_ih, w_hh, b_ih, b_hh, w_fc, b_fc):
    """Pure-JAX f32 reference with PyTorch LSTM semantics (gate order [i,f,g,o])."""
    B, T, _ = x.shape
    H = HIDDEN_SIZE
    h = jnp.zeros((B, H), jnp.float32)
    c = jnp.zeros((B, H), jnp.float32)
    for t in range(T):
        g = x[:, t, :] @ w_ih.T + h @ w_hh.T + b_ih + b_hh
        i = jax.nn.sigmoid(g[:, 0 * H:1 * H])
        f = jax.nn.sigmoid(g[:, 1 * H:2 * H])
        gg = jnp.tanh(g[:, 2 * H:3 * H])
        o = jax.nn.sigmoid(g[:, 3 * H:4 * H])
        c = f * c + i * gg
        h = o * jnp.tanh(c)
    return h @ w_fc.T + b_fc


if __name__ == "__main__":
    key = jax.random.PRNGKey(0)
    ks = jax.random.split(key, 7)
    scale = 0.1
    # Deterministic synthetic parameters with nn.LSTM / nn.Linear shapes.
    w_ih = scale * jax.random.normal(ks[0], (4 * HIDDEN_SIZE, INPUT_SIZE), jnp.float32)
    w_hh = scale * jax.random.normal(ks[1], (4 * HIDDEN_SIZE, HIDDEN_SIZE), jnp.float32)
    b_ih = scale * jax.random.normal(ks[2], (4 * HIDDEN_SIZE,), jnp.float32)
    b_hh = scale * jax.random.normal(ks[3], (4 * HIDDEN_SIZE,), jnp.float32)
    w_fc = scale * jax.random.normal(ks[4], (OUTPUT_SIZE, HIDDEN_SIZE), jnp.float32)
    b_fc = scale * jax.random.normal(ks[5], (OUTPUT_SIZE,), jnp.float32)

    x = jax.random.normal(ks[6], (BATCH, SEQ, INPUT_SIZE), jnp.float32)

    # One-time parameter repacking (model-load path, not per-call).
    packed = prepare_params(w_ih, w_hh, b_ih, b_hh, w_fc, b_fc)
    packed = jax.block_until_ready(packed)

    out = stock_predictor_forward(x, *packed)
    out = jax.block_until_ready(out)

    ref = _reference_forward(x, w_ih, w_hh, b_ih, b_hh, w_fc, b_fc)
    assert out.shape == (BATCH, OUTPUT_SIZE)
    # Tolerance relaxed (bf16 recurrent matmul with f32 accumulation).
    assert jnp.allclose(out, ref, atol=1e-2, rtol=1e-2), (out, ref)

    print("KERNEL_OK")
</pallas_src>

<mosaic_0001>
module attributes {stable_mosaic.version = 11 : i64} {
  func.func @lstm_kernel(%arg0: memref<8x8x1xf32, #tpu.memory_space<vmem>>, %arg1: memref<1x512xf32, #tpu.memory_space<vmem>>, %arg2: memref<128x512xbf16, #tpu.memory_space<vmem>>, %arg3: memref<1x512xf32, #tpu.memory_space<vmem>>, %arg4: memref<1x128xf32, #tpu.memory_space<vmem>>, %arg5: memref<1x1xf32, #tpu.memory_space<smem>>, %arg6: memref<8x128xf32, #tpu.memory_space<vmem>>) attributes {dimension_semantics = [], scalar_prefetch = 0 : i64, scratch_operands = 0 : i64, tpu.core_type = #tpu.core_type<tc>} {
    %c0 = arith.constant 0 : index
    %c0_0 = arith.constant 0 : index
    %0 = vector.load %arg1[%c0, %c0_0] : memref<1x512xf32, #tpu.memory_space<vmem>>, vector<1x512xf32>
    %c0_1 = arith.constant 0 : index
    %c0_2 = arith.constant 0 : index
    %1 = vector.load %arg3[%c0_1, %c0_2] : memref<1x512xf32, #tpu.memory_space<vmem>>, vector<1x512xf32>
    %c0_3 = arith.constant 0 : index
    %c0_4 = arith.constant 0 : index
    %2 = vector.load %arg2[%c0_3, %c0_4] : memref<128x512xbf16, #tpu.memory_space<vmem>>, vector<128x512xbf16>
    %cst = arith.constant 0.000000e+00 : f32
    %3 = vector.broadcast %cst : f32 to vector<8x128xf32>
    %cst_5 = arith.constant 0.000000e+00 : f32
    %4 = vector.broadcast %cst_5 : f32 to vector<8x128xf32>
    %c0_i32 = arith.constant 0 : i32
    %5 = arith.index_cast %c0_i32 : i32 to index
    %c0_6 = arith.constant 0 : index
    %c0_7 = arith.constant 0 : index
    %6 = vector.load %arg0[%5, %c0_6, %c0_7] : memref<8x8x1xf32, #tpu.memory_space<vmem>>, vector<1x8x1xf32>
    %7 = vector.shape_cast %6 : vector<1x8x1xf32> to vector<8x1xf32>
    %8 = vector.broadcast %7 : vector<8x1xf32> to vector<8x512xf32>
    %9 = vector.broadcast %0 : vector<1x512xf32> to vector<8x512xf32>
    %10 = arith.mulf %8, %9 : vector<8x512xf32>
    %11 = vector.broadcast %1 : vector<1x512xf32> to vector<8x512xf32>
    %12 = arith.addf %10, %11 : vector<8x512xf32>
    %13 = arith.truncf %3 : vector<8x128xf32> to vector<8x128xbf16>
    %cst_8 = arith.constant dense<0.000000e+00> : vector<8x512xf32>
    %14 = tpu.matmul %13, %2, %cst_8 {dimension_numbers = #tpu.dot_dimension_numbers<[1], [0], [0], [1], [0, 0, 1, 1], [], []>} : vector<8x128xbf16>, vector<128x512xbf16>, vector<8x512xf32> -> vector<8x512xf32>
    %15 = arith.addf %14, %12 : vector<8x512xf32>
    %16 = vector.extract_strided_slice %15 {offsets = [0, 0], sizes = [8, 384], strides = [1, 1]} : vector<8x512xf32> to vector<8x384xf32>
    %17 = arith.negf %16 : vector<8x384xf32>
    %18 = math.exp %17 : vector<8x384xf32>
    %cst_9 = arith.constant 1.000000e+00 : f32
    %19 = vector.broadcast %cst_9 : f32 to vector<8x384xf32>
    %20 = arith.addf %19, %18 : vector<8x384xf32>
    %21 = arith.divf %19, %20 : vector<8x384xf32>
    %22 = vector.extract_strided_slice %15 {offsets = [0, 384], sizes = [8, 128], strides = [1, 1]} : vector<8x512xf32> to vector<8x128xf32>
    %23 = math.tanh %22 : vector<8x128xf32>
    %24 = vector.extract_strided_slice %21 {offsets = [0, 0], sizes = [8, 128], strides = [1, 1]} : vector<8x384xf32> to vector<8x128xf32>
    %25 = vector.extract_strided_slice %21 {offsets = [0, 128], sizes = [8, 128], strides = [1, 1]} : vector<8x384xf32> to vector<8x128xf32>
    %26 = vector.extract_strided_slice %21 {offsets = [0, 256], sizes = [8, 128], strides = [1, 1]} : vector<8x384xf32> to vector<8x128xf32>
    %27 = arith.mulf %25, %4 : vector<8x128xf32>
    %28 = arith.mulf %24, %23 : vector<8x128xf32>
    %29 = arith.addf %27, %28 : vector<8x128xf32>
    %30 = math.tanh %29 : vector<8x128xf32>
    %31 = arith.mulf %26, %30 : vector<8x128xf32>
    %c1_i32 = arith.constant 1 : i32
    %32 = arith.index_cast %c1_i32 : i32 to index
    %c0_10 = arith.constant 0 : index
    %c0_11 = arith.constant 0 : index
    %33 = vector.load %arg0[%32, %c0_10, %c0_11] : memref<8x8x1xf32, #tpu.memory_space<vmem>>, vector<1x8x1xf32>
    %34 = vector.shape_cast %33 : vector<1x8x1xf32> to vector<8x1xf32>
    %35 = vector.broadcast %34 : vector<8x1xf32> to vector<8x512xf32>
    %36 = vector.broadcast %0 : vector<1x512xf32> to vector<8x512xf32>
    %37 = arith.mulf %35, %36 : vector<8x512xf32>
    %38 = vector.broadcast %1 : vector<1x512xf32> to vector<8x512xf32>
    %39 = arith.addf %37, %38 : vector<8x512xf32>
    %40 = arith.truncf %31 : vector<8x128xf32> to vector<8x128xbf16>
    %cst_12 = arith.constant dense<0.000000e+00> : vector<8x512xf32>
    %41 = tpu.matmul %40, %2, %cst_12 {dimension_numbers = #tpu.dot_dimension_numbers<[1], [0], [0], [1], [0, 0, 1, 1], [], []>} : vector<8x128xbf16>, vector<128x512xbf16>, vector<8x512xf32> -> vector<8x512xf32>
    %42 = arith.addf %41, %39 : vector<8x512xf32>
    %43 = vector.extract_strided_slice %42 {offsets = [0, 0], sizes = [8, 384], strides = [1, 1]} : vector<8x512xf32> to vector<8x384xf32>
    %44 = arith.negf %43 : vector<8x384xf32>
    %45 = math.exp %44 : vector<8x384xf32>
    %cst_13 = arith.constant 1.000000e+00 : f32
    %46 = vector.broadcast %cst_13 : f32 to vector<8x384xf32>
    %47 = arith.addf %46, %45 : vector<8x384xf32>
    %48 = arith.divf %46, %47 : vector<8x384xf32>
    %49 = vector.extract_strided_slice %42 {offsets = [0, 384], sizes = [8, 128], strides = [1, 1]} : vector<8x512xf32> to vector<8x128xf32>
    %50 = math.tanh %49 : vector<8x128xf32>
    %51 = vector.extract_strided_slice %48 {offsets = [0, 0], sizes = [8, 128], strides = [1, 1]} : vector<8x384xf32> to vector<8x128xf32>
    %52 = vector.extract_strided_slice %48 {offsets = [0, 128], sizes = [8, 128], strides = [1, 1]} : vector<8x384xf32> to vector<8x128xf32>
    %53 = vector.extract_strided_slice %48 {offsets = [0, 256], sizes = [8, 128], strides = [1, 1]} : vector<8x384xf32> to vector<8x128xf32>
    %54 = arith.mulf %52, %29 : vector<8x128xf32>
    %55 = arith.mulf %51, %50 : vector<8x128xf32>
    %56 = arith.addf %54, %55 : vector<8x128xf32>
    %57 = math.tanh %56 : vector<8x128xf32>
    %58 = arith.mulf %53, %57 : vector<8x128xf32>
    %c2_i32 = arith.constant 2 : i32
    %59 = arith.index_cast %c2_i32 : i32 to index
    %c0_14 = arith.constant 0 : index
    %c0_15 = arith.constant 0 : index
    %60 = vector.load %arg0[%59, %c0_14, %c0_15] : memref<8x8x1xf32, #tpu.memory_space<vmem>>, vector<1x8x1xf32>
    %61 = vector.shape_cast %60 : vector<1x8x1xf32> to vector<8x1xf32>
    %62 = vector.broadcast %61 : vector<8x1xf32> to vector<8x512xf32>
    %63 = vector.broadcast %0 : vector<1x512xf32> to vector<8x512xf32>
    %64 = arith.mulf %62, %63 : vector<8x512xf32>
    %65 = vector.broadcast %1 : vector<1x512xf32> to vector<8x512xf32>
    %66 = arith.addf %64, %65 : vector<8x512xf32>
    %67 = arith.truncf %58 : vector<8x128xf32> to vector<8x128xbf16>
    %cst_16 = arith.constant dense<0.000000e+00> : vector<8x512xf32>
    %68 = tpu.matmul %67, %2, %cst_16 {dimension_numbers = #tpu.dot_dimension_numbers<[1], [0], [0], [1], [0, 0, 1, 1], [], []>} : vector<8x128xbf16>, vector<128x512xbf16>, vector<8x512xf32> -> vector<8x512xf32>
    %69 = arith.addf %68, %66 : vector<8x512xf32>
    %70 = vector.extract_strided_slice %69 {offsets = [0, 0], sizes = [8, 384], strides = [1, 1]} : vector<8x512xf32> to vector<8x384xf32>
    %71 = arith.negf %70 : vector<8x384xf32>
    %72 = math.exp %71 : vector<8x384xf32>
    %cst_17 = arith.constant 1.000000e+00 : f32
    %73 = vector.broadcast %cst_17 : f32 to vector<8x384xf32>
    %74 = arith.addf %73, %72 : vector<8x384xf32>
    %75 = arith.divf %73, %74 : vector<8x384xf32>
    %76 = vector.extract_strided_slice %69 {offsets = [0, 384], sizes = [8, 128], strides = [1, 1]} : vector<8x512xf32> to vector<8x128xf32>
    %77 = math.tanh %76 : vector<8x128xf32>
    %78 = vector.extract_strided_slice %75 {offsets = [0, 0], sizes = [8, 128], strides = [1, 1]} : vector<8x384xf32> to vector<8x128xf32>
    %79 = vector.extract_strided_slice %75 {offsets = [0, 128], sizes = [8, 128], strides = [1, 1]} : vector<8x384xf32> to vector<8x128xf32>
    %80 = vector.extract_strided_slice %75 {offsets = [0, 256], sizes = [8, 128], strides = [1, 1]} : vector<8x384xf32> to vector<8x128xf32>
    %81 = arith.mulf %79, %56 : vector<8x128xf32>
    %82 = arith.mulf %78, %77 : vector<8x128xf32>
    %83 = arith.addf %81, %82 : vector<8x128xf32>
    %84 = math.tanh %83 : vector<8x128xf32>
    %85 = arith.mulf %80, %84 : vector<8x128xf32>
    %c3_i32 = arith.constant 3 : i32
    %86 = arith.index_cast %c3_i32 : i32 to index
    %c0_18 = arith.constant 0 : index
    %c0_19 = arith.constant 0 : index
    %87 = vector.load %arg0[%86, %c0_18, %c0_19] : memref<8x8x1xf32, #tpu.memory_space<vmem>>, vector<1x8x1xf32>
    %88 = vector.shape_cast %87 : vector<1x8x1xf32> to vector<8x1xf32>
    %89 = vector.broadcast %88 : vector<8x1xf32> to vector<8x512xf32>
    %90 = vector.broadcast %0 : vector<1x512xf32> to vector<8x512xf32>
    %91 = arith.mulf %89, %90 : vector<8x512xf32>
    %92 = vector.broadcast %1 : vector<1x512xf32> to vector<8x512xf32>
    %93 = arith.addf %91, %92 : vector<8x512xf32>
    %94 = arith.truncf %85 : vector<8x128xf32> to vector<8x128xbf16>
    %cst_20 = arith.constant dense<0.000000e+00> : vector<8x512xf32>
    %95 = tpu.matmul %94, %2, %cst_20 {dimension_numbers = #tpu.dot_dimension_numbers<[1], [0], [0], [1], [0, 0, 1, 1], [], []>} : vector<8x128xbf16>, vector<128x512xbf16>, vector<8x512xf32> -> vector<8x512xf32>
    %96 = arith.addf %95, %93 : vector<8x512xf32>
    %97 = vector.extract_strided_slice %96 {offsets = [0, 0], sizes = [8, 384], strides = [1, 1]} : vector<8x512xf32> to vector<8x384xf32>
    %98 = arith.negf %97 : vector<8x384xf32>
    %99 = math.exp %98 : vector<8x384xf32>
    %cst_21 = arith.constant 1.000000e+00 : f32
    %100 = vector.broadcast %cst_21 : f32 to vector<8x384xf32>
    %101 = arith.addf %100, %99 : vector<8x384xf32>
    %102 = arith.divf %100, %101 : vector<8x384xf32>
    %103 = vector.extract_strided_slice %96 {offsets = [0, 384], sizes = [8, 128], strides = [1, 1]} : vector<8x512xf32> to vector<8x128xf32>
    %104 = math.tanh %103 : vector<8x128xf32>
    %105 = vector.extract_strided_slice %102 {offsets = [0, 0], sizes = [8, 128], strides = [1, 1]} : vector<8x384xf32> to vector<8x128xf32>
    %106 = vector.extract_strided_slice %102 {offsets = [0, 128], sizes = [8, 128], strides = [1, 1]} : vector<8x384xf32> to vector<8x128xf32>
    %107 = vector.extract_strided_slice %102 {offsets = [0, 256], sizes = [8, 128], strides = [1, 1]} : vector<8x384xf32> to vector<8x128xf32>
    %108 = arith.mulf %106, %83 : vector<8x128xf32>
    %109 = arith.mulf %105, %104 : vector<8x128xf32>
    %110 = arith.addf %108, %109 : vector<8x128xf32>
    %111 = math.tanh %110 : vector<8x128xf32>
    %112 = arith.mulf %107, %111 : vector<8x128xf32>
    %c4_i32 = arith.constant 4 : i32
    %113 = arith.index_cast %c4_i32 : i32 to index
    %c0_22 = arith.constant 0 : index
    %c0_23 = arith.constant 0 : index
    %114 = vector.load %arg0[%113, %c0_22, %c0_23] : memref<8x8x1xf32, #tpu.memory_space<vmem>>, vector<1x8x1xf32>
    %115 = vector.shape_cast %114 : vector<1x8x1xf32> to vector<8x1xf32>
    %116 = vector.broadcast %115 : vector<8x1xf32> to vector<8x512xf32>
    %117 = vector.broadcast %0 : vector<1x512xf32> to vector<8x512xf32>
    %118 = arith.mulf %116, %117 : vector<8x512xf32>
    %119 = vector.broadcast %1 : vector<1x512xf32> to vector<8x512xf32>
    %120 = arith.addf %118, %119 : vector<8x512xf32>
    %121 = arith.truncf %112 : vector<8x128xf32> to vector<8x128xbf16>
    %cst_24 = arith.constant dense<0.000000e+00> : vector<8x512xf32>
    %122 = tpu.matmul %121, %2, %cst_24 {dimension_numbers = #tpu.dot_dimension_numbers<[1], [0], [0], [1], [0, 0, 1, 1], [], []>} : vector<8x128xbf16>, vector<128x512xbf16>, vector<8x512xf32> -> vector<8x512xf32>
    %123 = arith.addf %122, %120 : vector<8x512xf32>
    %124 = vector.extract_strided_slice %123 {offsets = [0, 0], sizes = [8, 384], strides = [1, 1]} : vector<8x512xf32> to vector<8x384xf32>
    %125 = arith.negf %124 : vector<8x384xf32>
    %126 = math.exp %125 : vector<8x384xf32>
    %cst_25 = arith.constant 1.000000e+00 : f32
    %127 = vector.broadcast %cst_25 : f32 to vector<8x384xf32>
    %128 = arith.addf %127, %126 : vector<8x384xf32>
    %129 = arith.divf %127, %128 : vector<8x384xf32>
    %130 = vector.extract_strided_slice %123 {offsets = [0, 384], sizes = [8, 128], strides = [1, 1]} : vector<8x512xf32> to vector<8x128xf32>
    %131 = math.tanh %130 : vector<8x128xf32>
    %132 = vector.extract_strided_slice %129 {offsets = [0, 0], sizes = [8, 128], strides = [1, 1]} : vector<8x384xf32> to vector<8x128xf32>
    %133 = vector.extract_strided_slice %129 {offsets = [0, 128], sizes = [8, 128], strides = [1, 1]} : vector<8x384xf32> to vector<8x128xf32>
    %134 = vector.extract_strided_slice %129 {offsets = [0, 256], sizes = [8, 128], strides = [1, 1]} : vector<8x384xf32> to vector<8x128xf32>
    %135 = arith.mulf %133, %110 : vector<8x128xf32>
    %136 = arith.mulf %132, %131 : vector<8x128xf32>
    %137 = arith.addf %135, %136 : vector<8x128xf32>
    %138 = math.tanh %137 : vector<8x128xf32>
    %139 = arith.mulf %134, %138 : vector<8x128xf32>
    %c5_i32 = arith.constant 5 : i32
    %140 = arith.index_cast %c5_i32 : i32 to index
    %c0_26 = arith.constant 0 : index
    %c0_27 = arith.constant 0 : index
    %141 = vector.load %arg0[%140, %c0_26, %c0_27] : memref<8x8x1xf32, #tpu.memory_space<vmem>>, vector<1x8x1xf32>
    %142 = vector.shape_cast %141 : vector<1x8x1xf32> to vector<8x1xf32>
    %143 = vector.broadcast %142 : vector<8x1xf32> to vector<8x512xf32>
    %144 = vector.broadcast %0 : vector<1x512xf32> to vector<8x512xf32>
    %145 = arith.mulf %143, %144 : vector<8x512xf32>
    %146 = vector.broadcast %1 : vector<1x512xf32> to vector<8x512xf32>
    %147 = arith.addf %145, %146 : vector<8x512xf32>
    %148 = arith.truncf %139 : vector<8x128xf32> to vector<8x128xbf16>
    %cst_28 = arith.constant dense<0.000000e+00> : vector<8x512xf32>
    %149 = tpu.matmul %148, %2, %cst_28 {dimension_numbers = #tpu.dot_dimension_numbers<[1], [0], [0], [1], [0, 0, 1, 1], [], []>} : vector<8x128xbf16>, vector<128x512xbf16>, vector<8x512xf32> -> vector<8x512xf32>
    %150 = arith.addf %149, %147 : vector<8x512xf32>
    %151 = vector.extract_strided_slice %150 {offsets = [0, 0], sizes = [8, 384], strides = [1, 1]} : vector<8x512xf32> to vector<8x384xf32>
    %152 = arith.negf %151 : vector<8x384xf32>
    %153 = math.exp %152 : vector<8x384xf32>
    %cst_29 = arith.constant 1.000000e+00 : f32
    %154 = vector.broadcast %cst_29 : f32 to vector<8x384xf32>
    %155 = arith.addf %154, %153 : vector<8x384xf32>
    %156 = arith.divf %154, %155 : vector<8x384xf32>
    %157 = vector.extract_strided_slice %150 {offsets = [0, 384], sizes = [8, 128], strides = [1, 1]} : vector<8x512xf32> to vector<8x128xf32>
    %158 = math.tanh %157 : vector<8x128xf32>
    %159 = vector.extract_strided_slice %156 {offsets = [0, 0], sizes = [8, 128], strides = [1, 1]} : vector<8x384xf32> to vector<8x128xf32>
    %160 = vector.extract_strided_slice %156 {offsets = [0, 128], sizes = [8, 128], strides = [1, 1]} : vector<8x384xf32> to vector<8x128xf32>
    %161 = vector.extract_strided_slice %156 {offsets = [0, 256], sizes = [8, 128], strides = [1, 1]} : vector<8x384xf32> to vector<8x128xf32>
    %162 = arith.mulf %160, %137 : vector<8x128xf32>
    %163 = arith.mulf %159, %158 : vector<8x128xf32>
    %164 = arith.addf %162, %163 : vector<8x128xf32>
    %165 = math.tanh %164 : vector<8x128xf32>
    %166 = arith.mulf %161, %165 : vector<8x128xf32>
    %c6_i32 = arith.constant 6 : i32
    %167 = arith.index_cast %c6_i32 : i32 to index
    %c0_30 = arith.constant 0 : index
    %c0_31 = arith.constant 0 : index
    %168 = vector.load %arg0[%167, %c0_30, %c0_31] : memref<8x8x1xf32, #tpu.memory_space<vmem>>, vector<1x8x1xf32>
    %169 = vector.shape_cast %168 : vector<1x8x1xf32> to vector<8x1xf32>
    %170 = vector.broadcast %169 : vector<8x1xf32> to vector<8x512xf32>
    %171 = vector.broadcast %0 : vector<1x512xf32> to vector<8x512xf32>
    %172 = arith.mulf %170, %171 : vector<8x512xf32>
    %173 = vector.broadcast %1 : vector<1x512xf32> to vector<8x512xf32>
    %174 = arith.addf %172, %173 : vector<8x512xf32>
    %175 = arith.truncf %166 : vector<8x128xf32> to vector<8x128xbf16>
    %cst_32 = arith.constant dense<0.000000e+00> : vector<8x512xf32>
    %176 = tpu.matmul %175, %2, %cst_32 {dimension_numbers = #tpu.dot_dimension_numbers<[1], [0], [0], [1], [0, 0, 1, 1], [], []>} : vector<8x128xbf16>, vector<128x512xbf16>, vector<8x512xf32> -> vector<8x512xf32>
    %177 = arith.addf %176, %174 : vector<8x512xf32>
    %178 = vector.extract_strided_slice %177 {offsets = [0, 0], sizes = [8, 384], strides = [1, 1]} : vector<8x512xf32> to vector<8x384xf32>
    %179 = arith.negf %178 : vector<8x384xf32>
    %180 = math.exp %179 : vector<8x384xf32>
    %cst_33 = arith.constant 1.000000e+00 : f32
    %181 = vector.broadcast %cst_33 : f32 to vector<8x384xf32>
    %182 = arith.addf %181, %180 : vector<8x384xf32>
    %183 = arith.divf %181, %182 : vector<8x384xf32>
    %184 = vector.extract_strided_slice %177 {offsets = [0, 384], sizes = [8, 128], strides = [1, 1]} : vector<8x512xf32> to vector<8x128xf32>
    %185 = math.tanh %184 : vector<8x128xf32>
    %186 = vector.extract_strided_slice %183 {offsets = [0, 0], sizes = [8, 128], strides = [1, 1]} : vector<8x384xf32> to vector<8x128xf32>
    %187 = vector.extract_strided_slice %183 {offsets = [0, 128], sizes = [8, 128], strides = [1, 1]} : vector<8x384xf32> to vector<8x128xf32>
    %188 = vector.extract_strided_slice %183 {offsets = [0, 256], sizes = [8, 128], strides = [1, 1]} : vector<8x384xf32> to vector<8x128xf32>
    %189 = arith.mulf %187, %164 : vector<8x128xf32>
    %190 = arith.mulf %186, %185 : vector<8x128xf32>
    %191 = arith.addf %189, %190 : vector<8x128xf32>
    %192 = math.tanh %191 : vector<8x128xf32>
    %193 = arith.mulf %188, %192 : vector<8x128xf32>
    %c7_i32 = arith.constant 7 : i32
    %194 = arith.index_cast %c7_i32 : i32 to index
    %c0_34 = arith.constant 0 : index
    %c0_35 = arith.constant 0 : index
    %195 = vector.load %arg0[%194, %c0_34, %c0_35] : memref<8x8x1xf32, #tpu.memory_space<vmem>>, vector<1x8x1xf32>
    %196 = vector.shape_cast %195 : vector<1x8x1xf32> to vector<8x1xf32>
    %197 = vector.broadcast %196 : vector<8x1xf32> to vector<8x512xf32>
    %198 = vector.broadcast %0 : vector<1x512xf32> to vector<8x512xf32>
    %199 = arith.mulf %197, %198 : vector<8x512xf32>
    %200 = vector.broadcast %1 : vector<1x512xf32> to vector<8x512xf32>
    %201 = arith.addf %199, %200 : vector<8x512xf32>
    %202 = arith.truncf %193 : vector<8x128xf32> to vector<8x128xbf16>
    %cst_36 = arith.constant dense<0.000000e+00> : vector<8x512xf32>
    %203 = tpu.matmul %202, %2, %cst_36 {dimension_numbers = #tpu.dot_dimension_numbers<[1], [0], [0], [1], [0, 0, 1, 1], [], []>} : vector<8x128xbf16>, vector<128x512xbf16>, vector<8x512xf32> -> vector<8x512xf32>
    %204 = arith.addf %203, %201 : vector<8x512xf32>
    %205 = vector.extract_strided_slice %204 {offsets = [0, 0], sizes = [8, 384], strides = [1, 1]} : vector<8x512xf32> to vector<8x384xf32>
    %206 = arith.negf %205 : vector<8x384xf32>
    %207 = math.exp %206 : vector<8x384xf32>
    %cst_37 = arith.constant 1.000000e+00 : f32
    %208 = vector.broadcast %cst_37 : f32 to vector<8x384xf32>
    %209 = arith.addf %208, %207 : vector<8x384xf32>
    %210 = arith.divf %208, %209 : vector<8x384xf32>
    %211 = vector.extract_strided_slice %204 {offsets = [0, 384], sizes = [8, 128], strides = [1, 1]} : vector<8x512xf32> to vector<8x128xf32>
    %212 = math.tanh %211 : vector<8x128xf32>
    %213 = vector.extract_strided_slice %210 {offsets = [0, 0], sizes = [8, 128], strides = [1, 1]} : vector<8x384xf32> to vector<8x128xf32>
    %214 = vector.extract_strided_slice %210 {offsets = [0, 128], sizes = [8, 128], strides = [1, 1]} : vector<8x384xf32> to vector<8x128xf32>
    %215 = vector.extract_strided_slice %210 {offsets = [0, 256], sizes = [8, 128], strides = [1, 1]} : vector<8x384xf32> to vector<8x128xf32>
    %216 = arith.mulf %214, %191 : vector<8x128xf32>
    %217 = arith.mulf %213, %212 : vector<8x128xf32>
    %218 = arith.addf %216, %217 : vector<8x128xf32>
    %219 = math.tanh %218 : vector<8x128xf32>
    %220 = arith.mulf %215, %219 : vector<8x128xf32>
    %c8_i32 = arith.constant 8 : i32
    %c0_38 = arith.constant 0 : index
    %c0_39 = arith.constant 0 : index
    %221 = vector.load %arg4[%c0_38, %c0_39] : memref<1x128xf32, #tpu.memory_space<vmem>>, vector<1x128xf32>
    %222 = vector.broadcast %221 : vector<1x128xf32> to vector<8x128xf32>
    %223 = arith.mulf %220, %222 : vector<8x128xf32>
    %cst_40 = arith.constant dense<0.000000e+00> : vector<8xf32>
    %224 = vector.multi_reduction <add>, %223, %cst_40 [1] : vector<8x128xf32> to vector<8xf32>
    %225 = vector.shape_cast %224 : vector<8xf32> to vector<8x1xf32>
    %c0_41 = arith.constant 0 : index
    %c0_42 = arith.constant 0 : index
    %226 = memref.load %arg5[%c0_41, %c0_42] : memref<1x1xf32, #tpu.memory_space<smem>>
    %227 = vector.broadcast %226 : f32 to vector<8x1xf32>
    %228 = arith.addf %225, %227 : vector<8x1xf32>
    %229 = vector.shape_cast %228 : vector<8x1xf32> to vector<8x1xf32>
    %230 = vector.broadcast %229 : vector<8x1xf32> to vector<8x128xf32>
    %c0_43 = arith.constant 0 : index
    %c0_44 = arith.constant 0 : index
    %231 = vector.load %arg6[%c0_43, %c0_44] : memref<8x128xf32, #tpu.memory_space<vmem>>, vector<8x128xf32>
    tpu.vector_store %arg6[%c0_43, %c0_44], %230 {strides = array<i32>} : memref<8x128xf32, #tpu.memory_space<vmem>>, vector<8x128xf32>,
    return
  }
}

</mosaic_0001>

<llo_original>
// kernel: stock_predictor_forward.1
$region0: #{stock_predictor_forward.1}
  #allocation0 [shape = 'u32[]', space=smem, size = 0x4, offset = 0x4, fixed_abs, tag = 'smem constant byte address 0x4 - core index']
  #allocation1 [shape = 'u32[144,128]{1,0:T(1,128)}', space=vmem, size = 0x12000, scoped, tag = 'internal scratch']
  #allocation2 [shape = 'f32[1,1]{1,0:T(1,128)S(6)}', space=smem, size = 0x200, scoped, tag = 'scoped memory for stock_predictor_forward.1']
  %s0 = inlined_call_operand.vmem [shape: f32[8,8,1], index: 0, kind: input, shape index: {}]
  %s1 = inlined_call_operand.vmem [shape: f32[1,512], index: 1, kind: input, shape index: {}]
  %s2 = inlined_call_operand.hbm [shape: bf16[128,512], index: 2, kind: input, shape index: {}]
  %s3 = inlined_call_operand.vmem [shape: f32[1,512], index: 3, kind: input, shape index: {}]
  %s4 = inlined_call_operand.vmem [shape: f32[1,128], index: 4, kind: input, shape index: {}]
  %s5 = inlined_call_operand.<no memory space> [shape: f32[1,1], index: 5, kind: input, shape index: {}]
  %s6 = inlined_call_operand.vmem [shape: f32[8,128], index: 6, kind: output, shape index: {}]
  %s7 = sld [smem:[#allocation0]]
  $region38: #{stock_predictor_forward.1} parent=0
    _
  %s9 = ssub.s32 1, %s7
  %s10 = scalar_select 0, %s9, %s7
  %11 = sst [smem:[#allocation2]] %s5
  $region1: #{stock_predictor_forward.1} parent=0
    #allocation3 [shape = 'u8[131072]{0}', space=vmem, size = 0x20000, scoped, tag = 'input window, operand 2, single buffered']
    #allocation4 [shape = 's32[1]{0}', space=sflag, size = 0x4, scoped, tag = 'scoped memory for stock_predictor_forward.1']
    %12 = vsyncpa [#allocation4], 0
    // Predicated region
    $region2: #{stock_predictor_forward.1} parent=1 // pred_check
      _
    $region3: #{stock_predictor_forward.1} parent=1 // pred_check_branch
      %14 = sbr.rel (0) target = $region5
    $region4: #{stock_predictor_forward.1} parent=1 // pred_region
      _
    $region5: #{stock_predictor_forward.1} parent=1 // pred_fallthru
      _
    // Predicated region
    $region6: #{stock_predictor_forward.1} parent=1 // pred_check
      _
    $region7: #{stock_predictor_forward.1} parent=1 // pred_check_branch
      %16 = sbr.rel (0) target = $region9
    $region8: #{stock_predictor_forward.1} parent=1 // pred_region
      _
    $region9: #{stock_predictor_forward.1} parent=1 // pred_fallthru
      _
    // Predicated region
    $region10: #{stock_predictor_forward.1} parent=1 // pred_check
      _
    $region11: #{stock_predictor_forward.1} parent=1 // pred_check_branch
      %18 = sbr.rel (0) target = $region13
    $region12: #{stock_predictor_forward.1} parent=1 // pred_region
      %s20 = ssub.s32 4096, 4096
      %21 = vsyncadd [#allocation4], %s20
      %s22 = sshll.u32 [#allocation3], 4
      %s23 = int_to_ptr.vmem [resolvable:$true] %s22
      %28 = dma.hbm_to_vmem [thread:$0]  %s2, 4096, %s23, [#allocation4], 256, 256, 16
    $region13: #{stock_predictor_forward.1} parent=1 // pred_fallthru
      _
    // Predicated region
    $region14: #{stock_predictor_forward.1} parent=1 // pred_check
      _
    $region15: #{stock_predictor_forward.1} parent=1 // pred_check_branch
      %30 = sbr.rel (0) target = $region17
    $region16: #{stock_predictor_forward.1} parent=1 // pred_region
      _
    $region17: #{stock_predictor_forward.1} parent=1 // pred_fallthru
      _
    // Predicated region
    $region18: #{stock_predictor_forward.1} parent=1 // pred_check
      _
    $region19: #{stock_predictor_forward.1} parent=1 // pred_check_branch
      %32 = sbr.rel (0) target = $region21
    $region20: #{stock_predictor_forward.1} parent=1 // pred_region
      _
    $region21: #{stock_predictor_forward.1} parent=1 // pred_fallthru
      _
    // Predicated region
    $region22: #{stock_predictor_forward.1} parent=1 // pred_check
      _
    $region23: #{stock_predictor_forward.1} parent=1 // pred_check_branch
      %34 = sbr.rel (0) target = $region25
    $region24: #{stock_predictor_forward.1} parent=1 // pred_region
      _
    $region25: #{stock_predictor_forward.1} parent=1 // pred_fallthru
      _
    // Predicated region
    $region26: #{stock_predictor_forward.1} parent=1 // pred_check
      _
    $region27: #{stock_predictor_forward.1} parent=1 // pred_check_branch
      %36 = sbr.rel (0) target = $region29
    $region28: #{stock_predictor_forward.1} parent=1 // pred_region
      %37 = dma.done [#allocation4], 4096
    $region29: #{stock_predictor_forward.1} parent=1 // pred_fallthru
      _
    %v39 = vld [vmem:[%s1] sm:$0xf]
    %v40 = vld [vmem:[%s3] sm:$0xf]
    %v41 = vld [vmem:[#allocation3] sm:$0xff]
    %v42 = vld [vmem:[#allocation3 + $0x8] sm:$0xff]
    %v43 = vld [vmem:[#allocation3 + $0x10] sm:$0xff]
    %v44 = vld [vmem:[#allocation3 + $0x18] sm:$0xff]
    %v45 = vld [vmem:[#allocation3 + $0x20] sm:$0xff]
    %v46 = vld [vmem:[#allocation3 + $0x28] sm:$0xff]
    %v47 = vld [vmem:[#allocation3 + $0x30] sm:$0xff]
    %v48 = vld [vmem:[#allocation3 + $0x38] sm:$0xff]
    %v49 = vld [vmem:[#allocation3 + $0x40] sm:$0xff]
    %v50 = vld [vmem:[#allocation3 + $0x48] sm:$0xff]
    %v51 = vld [vmem:[#allocation3 + $0x50] sm:$0xff]
    %v52 = vld [vmem:[#allocation3 + $0x58] sm:$0xff]
    %v53 = vld [vmem:[#allocation3 + $0x60] sm:$0xff]
    %v54 = vld [vmem:[#allocation3 + $0x68] sm:$0xff]
    %v55 = vld [vmem:[#allocation3 + $0x70] sm:$0xff]
    %v56 = vld [vmem:[#allocation3 + $0x78] sm:$0xff]
    %v57 = vld [vmem:[#allocation3 + $0x80] sm:$0xff]
    %v58 = vld [vmem:[#allocation3 + $0x88] sm:$0xff]
    %v59 = vld [vmem:[#allocation3 + $0x90] sm:$0xff]
    %v60 = vld [vmem:[#allocation3 + $0x98] sm:$0xff]
    %v61 = vld [vmem:[#allocation3 + $0xa0] sm:$0xff]
    %v62 = vld [vmem:[#allocation3 + $0xa8] sm:$0xff]
    %v63 = vld [vmem:[#allocation3 + $0xb0] sm:$0xff]
    %v64 = vld [vmem:[#allocation3 + $0xb8] sm:$0xff]
    %v65 = vld [vmem:[#allocation3 + $0xc0] sm:$0xff]
    %v66 = vld [vmem:[#allocation3 + $0xc8] sm:$0xff]
    %v67 = vld [vmem:[#allocation3 + $0xd0] sm:$0xff]
    %v68 = vld [vmem:[#allocation3 + $0xd8] sm:$0xff]
    %v69 = vld [vmem:[#allocation3 + $0xe0] sm:$0xff]
    %v70 = vld [vmem:[#allocation3 + $0xe8] sm:$0xff]
    %v71 = vld [vmem:[#allocation3 + $0xf0] sm:$0xff]
    %v72 = vld [vmem:[#allocation3 + $0xf8] sm:$0xff]
    %v73 = vld [vmem:[%s0] sm:$0xff]
    %75 = vset.pattern.permute.xlu0 0
    %76 = vperm.xlu0 %75, %v73
    %v77 = vpop.permute.xlu0 %76
    %v80 = vlaneseq
    %v81 = vshrl.u32 %v80, 7
    %v82 = vsub.s32 0, %v81
    %v83 = vrot.slane %v39, %v82
    %v84 = vlaneseq
    %v85 = vshrl.u32 %v84, 7
    %v86 = vsub.s32 1, %v85
    %v87 = vrot.slane %v39, %v86
    %v88 = vlaneseq
    %v89 = vshrl.u32 %v88, 7
    %v90 = vsub.s32 2, %v89
    %v91 = vrot.slane %v39, %v90
    %v92 = vlaneseq
    %v93 = vshrl.u32 %v92, 7
    %v94 = vsub.s32 3, %v93
    %v95 = vrot.slane %v39, %v94
    %v100 = vmul.f32 %v77, %v83
    %v101 = vmul.f32 %v77, %v87
    %v102 = vmul.f32 %v77, %v91
    %v103 = vmul.f32 %v77, %v95
    %v105 = vlaneseq
    %v106 = vshrl.u32 %v105, 7
    %v107 = vsub.s32 0, %v106
    %v108 = vrot.slane %v40, %v107
    %v109 = vlaneseq
    %v110 = vshrl.u32 %v109, 7
    %v111 = vsub.s32 1, %v110
    %v112 = vrot.slane %v40, %v111
    %v113 = vlaneseq
    %v114 = vshrl.u32 %v113, 7
    %v115 = vsub.s32 2, %v114
    %v116 = vrot.slane %v40, %v115
    %v117 = vlaneseq
    %v118 = vshrl.u32 %v117, 7
    %v119 = vsub.s32 3, %v118
    %v120 = vrot.slane %v40, %v119
    %v125 = vadd.f32 %v100, %v108
    %v126 = vadd.f32 %v101, %v112
    %v127 = vadd.f32 %v102, %v116
    %v128 = vadd.f32 %v103, %v120
    %v161 = vunpack.c.l.b16 %v41
    %v162 = vunpack.c.h.b16 %v41
    %v163 = vunpack.c.l.b16 %v42
    %v164 = vunpack.c.h.b16 %v42
    %v165 = vunpack.c.l.b16 %v43
    %v166 = vunpack.c.h.b16 %v43
    %v167 = vunpack.c.l.b16 %v44
    %v168 = vunpack.c.h.b16 %v44
    %v169 = vunpack.c.l.b16 %v45
    %v170 = vunpack.c.h.b16 %v45
    %v171 = vunpack.c.l.b16 %v46
    %v172 = vunpack.c.h.b16 %v46
    %v173 = vunpack.c.l.b16 %v47
    %v174 = vunpack.c.h.b16 %v47
    %v175 = vunpack.c.l.b16 %v48
    %v176 = vunpack.c.h.b16 %v48
    %v177 = vunpack.c.l.b16 %v49
    %v178 = vunpack.c.h.b16 %v49
    %v179 = vunpack.c.l.b16 %v50
    %v180 = vunpack.c.h.b16 %v50
    %v181 = vunpack.c.l.b16 %v51
    %v182 = vunpack.c.h.b16 %v51
    %v183 = vunpack.c.l.b16 %v52
    %v184 = vunpack.c.h.b16 %v52
    %v185 = vunpack.c.l.b16 %v53
    %v186 = vunpack.c.h.b16 %v53
    %v187 = vunpack.c.l.b16 %v54
    %v188 = vunpack.c.h.b16 %v54
    %v189 = vunpack.c.l.b16 %v55
    %v190 = vunpack.c.h.b16 %v55
    %v191 = vunpack.c.l.b16 %v56
    %v192 = vunpack.c.h.b16 %v56
    %v193 = vunpack.c.l.b16 %v57
    %v194 = vunpack.c.h.b16 %v57
    %v195 = vunpack.c.l.b16 %v58
    %v196 = vunpack.c.h.b16 %v58
    %v197 = vunpack.c.l.b16 %v59
    %v198 = vunpack.c.h.b16 %v59
    %v199 = vunpack.c.l.b16 %v60
    %v200 = vunpack.c.h.b16 %v60
    %v201 = vunpack.c.l.b16 %v61
    %v202 = vunpack.c.h.b16 %v61
    %v203 = vunpack.c.l.b16 %v62
    %v204 = vunpack.c.h.b16 %v62
    %v205 = vunpack.c.l.b16 %v63
    %v206 = vunpack.c.h.b16 %v63
    %v207 = vunpack.c.l.b16 %v64
    %v208 = vunpack.c.h.b16 %v64
    %v209 = vunpack.c.l.b16 %v65
    %v210 = vunpack.c.h.b16 %v65
    %v211 = vunpack.c.l.b16 %v66
    %v212 = vunpack.c.h.b16 %v66
    %v213 = vunpack.c.l.b16 %v67
    %v214 = vunpack.c.h.b16 %v67
    %v215 = vunpack.c.l.b16 %v68
    %v216 = vunpack.c.h.b16 %v68
    %v217 = vunpack.c.l.b16 %v69
    %v218 = vunpack.c.h.b16 %v69
    %v219 = vunpack.c.l.b16 %v70
    %v220 = vunpack.c.h.b16 %v70
    %v221 = vunpack.c.l.b16 %v71
    %v222 = vunpack.c.h.b16 %v71
    %v223 = vunpack.c.l.b16 %v72
    %v224 = vunpack.c.h.b16 %v72
    %v225 = vpack.c.b16 %v165, %v161
    %v226 = vpack.c.b16 %v166, %v162
    %v227 = vpack.c.b16 %v167, %v163
    %v228 = vpack.c.b16 %v168, %v164
    %v229 = vpack.c.b16 %v173, %v169
    %v230 = vpack.c.b16 %v174, %v170
    %v231 = vpack.c.b16 %v175, %v171
    %v232 = vpack.c.b16 %v176, %v172
    %v233 = vpack.c.b16 %v181, %v177
    %v234 = vpack.c.b16 %v182, %v178
    %v235 = vpack.c.b16 %v183, %v179
    %v236 = vpack.c.b16 %v184, %v180
    %v237 = vpack.c.b16 %v189, %v185
    %v238 = vpack.c.b16 %v190, %v186
    %v239 = vpack.c.b16 %v191, %v187
    %v240 = vpack.c.b16 %v192, %v188
    %v241 = vpack.c.b16 %v197, %v193
    %v242 = vpack.c.b16 %v198, %v194
    %v243 = vpack.c.b16 %v199, %v195
    %v244 = vpack.c.b16 %v200, %v196
    %v245 = vpack.c.b16 %v205, %v201
    %v246 = vpack.c.b16 %v206, %v202
    %v247 = vpack.c.b16 %v207, %v203
    %v248 = vpack.c.b16 %v208, %v204
    %v249 = vpack.c.b16 %v213, %v209
    %v250 = vpack.c.b16 %v214, %v210
    %v251 = vpack.c.b16 %v215, %v211
    %v252 = vpack.c.b16 %v216, %v212
    %v253 = vpack.c.b16 %v221, %v217
    %v254 = vpack.c.b16 %v222, %v218
    %v255 = vpack.c.b16 %v223, %v219
    %v256 = vpack.c.b16 %v224, %v220
    %289 = vmatprep.subr.bf16.mxu0 %v226
    %290 = vmatpush1.bf16.msra.mxu0 %v225
    %291 = vmatprep.subr.bf16.mxu0 %v230
    %292 = vmatpush1.bf16.msra.mxu0 %v229
    %293 = vmatprep.subr.bf16.mxu0 %v234
    %294 = vmatpush1.bf16.msra.mxu0 %v233
    %295 = vmatprep.subr.bf16.mxu0 %v238
    %296 = vmatpush1.bf16.msra.mxu0 %v237
    %297 = vmatprep.subr.bf16.mxu0 %v242
    %298 = vmatpush1.bf16.msra.mxu0 %v241
    %299 = vmatprep.subr.bf16.mxu0 %v246
    %300 = vmatpush1.bf16.msra.mxu0 %v245
    %301 = vmatprep.subr.bf16.mxu0 %v250
    %302 = vmatpush1.bf16.msra.mxu0 %v249
    %303 = vmatprep.subr.bf16.mxu0 %v254
    %304 = vmatpush1.bf16.msra.mxu0 %v253
    %305 = vmatprep.subr.bf16.mxu0 0
    %306 = vmatpush1.bf16.msra.mxu0 0
    %307 = vmatprep.subr.bf16.mxu0 0
    %308 = vmatpush1.bf16.msra.mxu0 0
    %309 = vmatprep.subr.bf16.mxu0 0
    %310 = vmatpush1.bf16.msra.mxu0 0
    %311 = vmatprep.subr.bf16.mxu0 0
    %312 = vmatpush1.bf16.msra.mxu0 0
    %313 = vmatprep.subr.bf16.mxu0 0
    %314 = vmatpush1.bf16.msra.mxu0 0
    %315 = vmatprep.subr.bf16.mxu0 0
    %316 = vmatpush1.bf16.msra.mxu0 0
    %317 = vmatprep.subr.bf16.mxu0 0
    %318 = vmatpush1.bf16.msra.mxu0 0
    %319 = vmatprep.subr.bf16.mxu0 0
    %320 = vmatpush1.bf16.msra.mxu0 0
    %321 = vmatprep.mubr.bf16.mxu0 0
    %322 = vmatmul.mubr.bf16.gmra.mrb[0].mxu0 0
    %v323 = vpop.f32.mrb[0].mxu0
    %v324 = vadd.f32 %v125, %v323
    %v325 = vpop.f32.mrb[0].mxu0
    %v326 = vadd.f32 %v126, %v325
    %v327 = vpop.f32.mrb[0].mxu0
    %v328 = vpop.f32.mrb[0].mxu0
    %329 = vdwg.mxu0
    %330 = vmatprep.subr.bf16.mxu0 %v228
    %331 = vmatpush1.bf16.msra.mxu0 %v227
    %332 = vmatprep.subr.bf16.mxu0 %v232
    %333 = vmatpush1.bf16.msra.mxu0 %v231
    %334 = vmatprep.subr.bf16.mxu0 %v236
    %335 = vmatpush1.bf16.msra.mxu0 %v235
    %336 = vmatprep.subr.bf16.mxu0 %v240
    %337 = vmatpush1.bf16.msra.mxu0 %v239
    %338 = vmatprep.subr.bf16.mxu0 %v244
    %339 = vmatpush1.bf16.msra.mxu0 %v243
    %340 = vmatprep.subr.bf16.mxu0 %v248
    %341 = vmatpush1.bf16.msra.mxu0 %v247
    %342 = vmatprep.subr.bf16.mxu0 %v252
    %343 = vmatpush1.bf16.msra.mxu0 %v251
    %344 = vmatprep.subr.bf16.mxu0 %v256
    %345 = vmatpush1.bf16.msra.mxu0 %v255
    %346 = vmatprep.subr.bf16.mxu0 0
    %347 = vmatpush1.bf16.msra.mxu0 0
    %348 = vmatprep.subr.bf16.mxu0 0
    %349 = vmatpush1.bf16.msra.mxu0 0
    %350 = vmatprep.subr.bf16.mxu0 0
    %351 = vmatpush1.bf16.msra.mxu0 0
    %352 = vmatprep.subr.bf16.mxu0 0
    %353 = vmatpush1.bf16.msra.mxu0 0
    %354 = vmatprep.subr.bf16.mxu0 0
    %355 = vmatpush1.bf16.msra.mxu0 0
    %356 = vmatprep.subr.bf16.mxu0 0
    %357 = vmatpush1.bf16.msra.mxu0 0
    %358 = vmatprep.subr.bf16.mxu0 0
    %359 = vmatpush1.bf16.msra.mxu0 0
    %360 = vmatprep.subr.bf16.mxu0 0
    %361 = vmatpush1.bf16.msra.mxu0 0
    %362 = vmatprep.mubr.bf16.mxu0 0
    %363 = vmatmul.mubr.bf16.gmra.mrb[0].mxu0 0
    %v364 = vpop.f32.mrb[0].mxu0
    %v365 = vadd.f32 %v127, %v364
    %v366 = vpop.f32.mrb[0].mxu0
    %v367 = vadd.f32 %v128, %v366
    %v368 = vpop.f32.mrb[0].mxu0
    %v369 = vpop.f32.mrb[0].mxu0
    %370 = vdwg.mxu0
    %v371 = vxor.u32 %v324, 2147483648
    %v372 = vxor.u32 %v326, 2147483648
    %v373 = vxor.u32 %v365, 2147483648
    %v374 = vmul.f32 %v371, 1.442695
    %v375 = vpow.pop %v374
    %v376 = vmul.f32 %v372, 1.442695
    %v377 = vpow.pop %v376
    %v378 = vmul.f32 %v373, 1.442695
    %v379 = vpow.pop %v378
    %v380 = vadd.f32 %v375, 1.0
    %v381 = vadd.f32 %v377, 1.0
    %v382 = vadd.f32 %v379, 1.0
    %v383 = vrcp.pop %v380
    %v384 = vmul.f32 1.0, %v383
    %v385 = vrcp.pop %v381
    %v386 = vmul.f32 1.0, %v385
    %v387 = vrcp.pop %v382
    %v388 = vmul.f32 1.0, %v387
    %v389 = vtanh.pop %v367
    %v390 = vmul.f32 %v386, 0.0
    %v391 = vmul.f32 %v384, %v389
    %v392 = vadd.f32 %v390, %v391
    %v393 = vtanh.pop %v392
    %v394 = vmul.f32 %v388, %v393
    %s395 = scalar_lea.vmem %s0, 8
    %v396 = vld [vmem:[%s395] sm:$0xff]
    %398 = vset.pattern.permute.xlu0 0
    %399 = vperm.xlu0 %398, %v396
    %v400 = vpop.permute.xlu0 %399
    %v402 = vmul.f32 %v400, %v83
    %v403 = vmul.f32 %v400, %v87
    %v404 = vmul.f32 %v400, %v91
    %v405 = vmul.f32 %v400, %v95
    %v406 = vadd.f32 %v402, %v108
    %v407 = vadd.f32 %v403, %v112
    %v408 = vadd.f32 %v404, %v116
    %v409 = vadd.f32 %v405, %v120
    %v410 = vpack.c.bf16 %v394, %v394
    %411 = vmatprep.subr.bf16.mxu0 %v226
    %412 = vmatpush1.bf16.msra.mxu0 %v225
    %413 = vmatprep.subr.bf16.mxu0 %v230
    %414 = vmatpush1.bf16.msra.mxu0 %v229
    %415 = vmatprep.subr.bf16.mxu0 %v234
    %416 = vmatpush1.bf16.msra.mxu0 %v233
    %417 = vmatprep.subr.bf16.mxu0 %v238
    %418 = vmatpush1.bf16.msra.mxu0 %v237
    %419 = vmatprep.subr.bf16.mxu0 %v242
    %420 = vmatpush1.bf16.msra.mxu0 %v241
    %421 = vmatprep.subr.bf16.mxu0 %v246
    %422 = vmatpush1.bf16.msra.mxu0 %v245
    %423 = vmatprep.subr.bf16.mxu0 %v250
    %424 = vmatpush1.bf16.msra.mxu0 %v249
    %425 = vmatprep.subr.bf16.mxu0 %v254
    %426 = vmatpush1.bf16.msra.mxu0 %v253
    %427 = vmatprep.subr.bf16.mxu0 0
    %428 = vmatpush1.bf16.msra.mxu0 0
    %429 = vmatprep.subr.bf16.mxu0 0
    %430 = vmatpush1.bf16.msra.mxu0 0
    %431 = vmatprep.subr.bf16.mxu0 0
    %432 = vmatpush1.bf16.msra.mxu0 0
    %433 = vmatprep.subr.bf16.mxu0 0
    %434 = vmatpush1.bf16.msra.mxu0 0
    %435 = vmatprep.subr.bf16.mxu0 0
    %436 = vmatpush1.bf16.msra.mxu0 0
    %437 = vmatprep.subr.bf16.mxu0 0
    %438 = vmatpush1.bf16.msra.mxu0 0
    %439 = vmatprep.subr.bf16.mxu0 0
    %440 = vmatpush1.bf16.msra.mxu0 0
    %441 = vmatprep.subr.bf16.mxu0 0
    %442 = vmatpush1.bf16.msra.mxu0 0
    %443 = vmatprep.mubr.bf16.mxu0 0
    %444 = vmatmul.mubr.bf16.gmra.mrb[0].mxu0 %v410
    %v445 = vpop.f32.mrb[0].mxu0
    %v446 = vadd.f32 %v406, %v445
    %v447 = vpop.f32.mrb[0].mxu0
    %v448 = vadd.f32 %v407, %v447
    %v449 = vpop.f32.mrb[0].mxu0
    %v450 = vpop.f32.mrb[0].mxu0
    %451 = vdwg.mxu0
    %452 = vmatprep.subr.bf16.mxu0 %v228
    %453 = vmatpush1.bf16.msra.mxu0 %v227
    %454 = vmatprep.subr.bf16.mxu0 %v232
    %455 = vmatpush1.bf16.msra.mxu0 %v231
    %456 = vmatprep.subr.bf16.mxu0 %v236
    %457 = vmatpush1.bf16.msra.mxu0 %v235
    %458 = vmatprep.subr.bf16.mxu0 %v240
    %459 = vmatpush1.bf16.msra.mxu0 %v239
    %460 = vmatprep.subr.bf16.mxu0 %v244
    %461 = vmatpush1.bf16.msra.mxu0 %v243
    %462 = vmatprep.subr.bf16.mxu0 %v248
    %463 = vmatpush1.bf16.msra.mxu0 %v247
    %464 = vmatprep.subr.bf16.mxu0 %v252
    %465 = vmatpush1.bf16.msra.mxu0 %v251
    %466 = vmatprep.subr.bf16.mxu0 %v256
    %467 = vmatpush1.bf16.msra.mxu0 %v255
    %468 = vmatprep.subr.bf16.mxu0 0
    %469 = vmatpush1.bf16.msra.mxu0 0
    %470 = vmatprep.subr.bf16.mxu0 0
    %471 = vmatpush1.bf16.msra.mxu0 0
    %472 = vmatprep.subr.bf16.mxu0 0
    %473 = vmatpush1.bf16.msra.mxu0 0
    %474 = vmatprep.subr.bf16.mxu0 0
    %475 = vmatpush1.bf16.msra.mxu0 0
    %476 = vmatprep.subr.bf16.mxu0 0
    %477 = vmatpush1.bf16.msra.mxu0 0
    %478 = vmatprep.subr.bf16.mxu0 0
    %479 = vmatpush1.bf16.msra.mxu0 0
    %480 = vmatprep.subr.bf16.mxu0 0
    %481 = vmatpush1.bf16.msra.mxu0 0
    %482 = vmatprep.subr.bf16.mxu0 0
    %483 = vmatpush1.bf16.msra.mxu0 0
    %484 = vmatprep.mubr.bf16.mxu0 0
    %485 = vmatmul.mubr.bf16.gmra.mrb[0].mxu0 %v410
    %v486 = vpop.f32.mrb[0].mxu0
    %v487 = vadd.f32 %v408, %v486
    %v488 = vpop.f32.mrb[0].mxu0
    %v489 = vadd.f32 %v409, %v488
    %v490 = vpop.f32.mrb[0].mxu0
    %v491 = vpop.f32.mrb[0].mxu0
    %492 = vdwg.mxu0
    %v493 = vxor.u32 %v446, 2147483648
    %v494 = vxor.u32 %v448, 2147483648
    %v495 = vxor.u32 %v487, 2147483648
    %v496 = vmul.f32 %v493, 1.442695
    %v497 = vpow.pop %v496
    %v498 = vmul.f32 %v494, 1.442695
    %v499 = vpow.pop %v498
    %v500 = vmul.f32 %v495, 1.442695
    %v501 = vpow.pop %v500
    %v502 = vadd.f32 %v497, 1.0
    %v503 = vadd.f32 %v499, 1.0
    %v504 = vadd.f32 %v501, 1.0
    %v505 = vrcp.pop %v502
    %v506 = vmul.f32 1.0, %v505
    %v507 = vrcp.pop %v503
    %v508 = vmul.f32 1.0, %v507
    %v509 = vrcp.pop %v504
    %v510 = vmul.f32 1.0, %v509
    %v511 = vtanh.pop %v489
    %v512 = vmul.f32 %v508, %v392
    %v513 = vmul.f32 %v506, %v511
    %v514 = vadd.f32 %v512, %v513
    %v515 = vtanh.pop %v514
    %v516 = vmul.f32 %v510, %v515
    %s517 = scalar_lea.vmem %s0, 16
    %v518 = vld [vmem:[%s517] sm:$0xff]
    %520 = vset.pattern.permute.xlu0 0
    %521 = vperm.xlu0 %520, %v518
    %v522 = vpop.permute.xlu0 %521
    %v524 = vmul.f32 %v522, %v83
    %v525 = vmul.f32 %v522, %v87
    %v526 = vmul.f32 %v522, %v91
    %v527 = vmul.f32 %v522, %v95
    %v528 = vadd.f32 %v524, %v108
    %v529 = vadd.f32 %v525, %v112
    %v530 = vadd.f32 %v526, %v116
    %v531 = vadd.f32 %v527, %v120
    %v532 = vpack.c.bf16 %v516, %v516
    %533 = vmatprep.subr.bf16.mxu0 %v226
    %534 = vmatpush1.bf16.msra.mxu0 %v225
    %535 = vmatprep.subr.bf16.mxu0 %v230
    %536 = vmatpush1.bf16.msra.mxu0 %v229
    %537 = vmatprep.subr.bf16.mxu0 %v234
    %538 = vmatpush1.bf16.msra.mxu0 %v233
    %539 = vmatprep.subr.bf16.mxu0 %v238
    %540 = vmatpush1.bf16.msra.mxu0 %v237
    %541 = vmatprep.subr.bf16.mxu0 %v242
    %542 = vmatpush1.bf16.msra.mxu0 %v241
    %543 = vmatprep.subr.bf16.mxu0 %v246
    %544 = vmatpush1.bf16.msra.mxu0 %v245
    %545 = vmatprep.subr.bf16.mxu0 %v250
    %546 = vmatpush1.bf16.msra.mxu0 %v249
    %547 = vmatprep.subr.bf16.mxu0 %v254
    %548 = vmatpush1.bf16.msra.mxu0 %v253
    %549 = vmatprep.subr.bf16.mxu0 0
    %550 = vmatpush1.bf16.msra.mxu0 0
    %551 = vmatprep.subr.bf16.mxu0 0
    %552 = vmatpush1.bf16.msra.mxu0 0
    %553 = vmatprep.subr.bf16.mxu0 0
    %554 = vmatpush1.bf16.msra.mxu0 0
    %555 = vmatprep.subr.bf16.mxu0 0
    %556 = vmatpush1.bf16.msra.mxu0 0
    %557 = vmatprep.subr.bf16.mxu0 0
    %558 = vmatpush1.bf16.msra.mxu0 0
    %559 = vmatprep.subr.bf16.mxu0 0
    %560 = vmatpush1.bf16.msra.mxu0 0
    %561 = vmatprep.subr.bf16.mxu0 0
    %562 = vmatpush1.bf16.msra.mxu0 0
    %563 = vmatprep.subr.bf16.mxu0 0
    %564 = vmatpush1.bf16.msra.mxu0 0
    %565 = vmatprep.mubr.bf16.mxu0 0
    %566 = vmatmul.mubr.bf16.gmra.mrb[0].mxu0 %v532
    %v567 = vpop.f32.mrb[0].mxu0
    %v568 = vadd.f32 %v528, %v567
    %v569 = vpop.f32.mrb[0].mxu0
    %v570 = vadd.f32 %v529, %v569
    %v571 = vpop.f32.mrb[0].mxu0
    %v572 = vpop.f32.mrb[0].mxu0
    %573 = vdwg.mxu0
    %574 = vmatprep.subr.bf16.mxu0 %v228
    %575 = vmatpush1.bf16.msra.mxu0 %v227
    %576 = vmatprep.subr.bf16.mxu0 %v232
    %577 = vmatpush1.bf16.msra.mxu0 %v231
    %578 = vmatprep.subr.bf16.mxu0 %v236
    %579 = vmatpush1.bf16.msra.mxu0 %v235
    %580 = vmatprep.subr.bf16.mxu0 %v240
    %581 = vmatpush1.bf16.msra.mxu0 %v239
    %582 = vmatprep.subr.bf16.mxu0 %v244
    %583 = vmatpush1.bf16.msra.mxu0 %v243
    %584 = vmatprep.subr.bf16.mxu0 %v248
    %585 = vmatpush1.bf16.msra.mxu0 %v247
    %586 = vmatprep.subr.bf16.mxu0 %v252
    %587 = vmatpush1.bf16.msra.mxu0 %v251
    %588 = vmatprep.subr.bf16.mxu0 %v256
    %589 = vmatpush1.bf16.msra.mxu0 %v255
    %590 = vmatprep.subr.bf16.mxu0 0
    %591 = vmatpush1.bf16.msra.mxu0 0
    %592 = vmatprep.subr.bf16.mxu0 0
    %593 = vmatpush1.bf16.msra.mxu0 0
    %594 = vmatprep.subr.bf16.mxu0 0
    %595 = vmatpush1.bf16.msra.mxu0 0
    %596 = vmatprep.subr.bf16.mxu0 0
    %597 = vmatpush1.bf16.msra.mxu0 0
    %598 = vmatprep.subr.bf16.mxu0 0
    %599 = vmatpush1.bf16.msra.mxu0 0
    %600 = vmatprep.subr.bf16.mxu0 0
    %601 = vmatpush1.bf16.msra.mxu0 0
    %602 = vmatprep.subr.bf16.mxu0 0
    %603 = vmatpush1.bf16.msra.mxu0 0
    %604 = vmatprep.subr.bf16.mxu0 0
    %605 = vmatpush1.bf16.msra.mxu0 0
    %606 = vmatprep.mubr.bf16.mxu0 0
    %607 = vmatmul.mubr.bf16.gmra.mrb[0].mxu0 %v532
    %v608 = vpop.f32.mrb[0].mxu0
    %v609 = vadd.f32 %v530, %v608
    %v610 = vpop.f32.mrb[0].mxu0
    %v611 = vadd.f32 %v531, %v610
    %v612 = vpop.f32.mrb[0].mxu0
    %v613 = vpop.f32.mrb[0].mxu0
    %614 = vdwg.mxu0
    %v615 = vxor.u32 %v568, 2147483648
    %v616 = vxor.u32 %v570, 2147483648
    %v617 = vxor.u32 %v609, 2147483648
    %v618 = vmul.f32 %v615, 1.442695
    %v619 = vpow.pop %v618
    %v620 = vmul.f32 %v616, 1.442695
    %v621 = vpow.pop %v620
    %v622 = vmul.f32 %v617, 1.442695
    %v623 = vpow.pop %v622
    %v624 = vadd.f32 %v619, 1.0
    %v625 = vadd.f32 %v621, 1.0
    %v626 = vadd.f32 %v623, 1.0
    %v627 = vrcp.pop %v624
    %v628 = vmul.f32 1.0, %v627
    %v629 = vrcp.pop %v625
    %v630 = vmul.f32 1.0, %v629
    %v631 = vrcp.pop %v626
    %v632 = vmul.f32 1.0, %v631
    %v633 = vtanh.pop %v611
    %v634 = vmul.f32 %v630, %v514
    %v635 = vmul.f32 %v628, %v633
    %v636 = vadd.f32 %v634, %v635
    %v637 = vtanh.pop %v636
    %v638 = vmul.f32 %v632, %v637
    %s639 = scalar_lea.vmem %s0, 24
    %v640 = vld [vmem:[%s639] sm:$0xff]
    %642 = vset.pattern.permute.xlu0 0
    %643 = vperm.xlu0 %642, %v640
    %v644 = vpop.permute.xlu0 %643
    %v646 = vmul.f32 %v644, %v83
    %v647 = vmul.f32 %v644, %v87
    %v648 = vmul.f32 %v644, %v91
    %v649 = vmul.f32 %v644, %v95
    %v650 = vadd.f32 %v646, %v108
    %v651 = vadd.f32 %v647, %v112
    %v652 = vadd.f32 %v648, %v116
    %v653 = vadd.f32 %v649, %v120
    %v654 = vpack.c.bf16 %v638, %v638
    %655 = vmatprep.subr.bf16.mxu0 %v226
    %656 = vmatpush1.bf16.msra.mxu0 %v225
    %657 = vmatprep.subr.bf16.mxu0 %v230
    %658 = vmatpush1.bf16.msra.mxu0 %v229
    %659 = vmatprep.subr.bf16.mxu0 %v234
    %660 = vmatpush1.bf16.msra.mxu0 %v233
    %661 = vmatprep.subr.bf16.mxu0 %v238
    %662 = vmatpush1.bf16.msra.mxu0 %v237
    %663 = vmatprep.subr.bf16.mxu0 %v242
    %664 = vmatpush1.bf16.msra.mxu0 %v241
    %665 = vmatprep.subr.bf16.mxu0 %v246
    %666 = vmatpush1.bf16.msra.mxu0 %v245
    %667 = vmatprep.subr.bf16.mxu0 %v250
    %668 = vmatpush1.bf16.msra.mxu0 %v249
    %669 = vmatprep.subr.bf16.mxu0 %v254
    %670 = vmatpush1.bf16.msra.mxu0 %v253
    %671 = vmatprep.subr.bf16.mxu0 0
    %672 = vmatpush1.bf16.msra.mxu0 0
    %673 = vmatprep.subr.bf16.mxu0 0
    %674 = vmatpush1.bf16.msra.mxu0 0
    %675 = vmatprep.subr.bf16.mxu0 0
    %676 = vmatpush1.bf16.msra.mxu0 0
    %677 = vmatprep.subr.bf16.mxu0 0
    %678 = vmatpush1.bf16.msra.mxu0 0
    %679 = vmatprep.subr.bf16.mxu0 0
    %680 = vmatpush1.bf16.msra.mxu0 0
    %681 = vmatprep.subr.bf16.mxu0 0
    %682 = vmatpush1.bf16.msra.mxu0 0
    %683 = vmatprep.subr.bf16.mxu0 0
    %684 = vmatpush1.bf16.msra.mxu0 0
    %685 = vmatprep.subr.bf16.mxu0 0
    %686 = vmatpush1.bf16.msra.mxu0 0
    %687 = vmatprep.mubr.bf16.mxu0 0
    %688 = vmatmul.mubr.bf16.gmra.mrb[0].mxu0 %v654
    %v689 = vpop.f32.mrb[0].mxu0
    %v690 = vadd.f32 %v650, %v689
    %v691 = vpop.f32.mrb[0].mxu0
    %v692 = vadd.f32 %v651, %v691
    %v693 = vpop.f32.mrb[0].mxu0
    %v694 = vpop.f32.mrb[0].mxu0
    %695 = vdwg.mxu0
    %696 = vmatprep.subr.bf16.mxu0 %v228
    %697 = vmatpush1.bf16.msra.mxu0 %v227
    %698 = vmatprep.subr.bf16.mxu0 %v232
    %699 = vmatpush1.bf16.msra.mxu0 %v231
    %700 = vmatprep.subr.bf16.mxu0 %v236
    %701 = vmatpush1.bf16.msra.mxu0 %v235
    %702 = vmatprep.subr.bf16.mxu0 %v240
    %703 = vmatpush1.bf16.msra.mxu0 %v239
    %704 = vmatprep.subr.bf16.mxu0 %v244
    %705 = vmatpush1.bf16.msra.mxu0 %v243
    %706 = vmatprep.subr.bf16.mxu0 %v248
    %707 = vmatpush1.bf16.msra.mxu0 %v247
    %708 = vmatprep.subr.bf16.mxu0 %v252
    %709 = vmatpush1.bf16.msra.mxu0 %v251
    %710 = vmatprep.subr.bf16.mxu0 %v256
    %711 = vmatpush1.bf16.msra.mxu0 %v255
    %712 = vmatprep.subr.bf16.mxu0 0
    %713 = vmatpush1.bf16.msra.mxu0 0
    %714 = vmatprep.subr.bf16.mxu0 0
    %715 = vmatpush1.bf16.msra.mxu0 0
    %716 = vmatprep.subr.bf16.mxu0 0
    %717 = vmatpush1.bf16.msra.mxu0 0
    %718 = vmatprep.subr.bf16.mxu0 0
    %719 = vmatpush1.bf16.msra.mxu0 0
    %720 = vmatprep.subr.bf16.mxu0 0
    %721 = vmatpush1.bf16.msra.mxu0 0
    %722 = vmatprep.subr.bf16.mxu0 0
    %723 = vmatpush1.bf16.msra.mxu0 0
    %724 = vmatprep.subr.bf16.mxu0 0
    %725 = vmatpush1.bf16.msra.mxu0 0
    %726 = vmatprep.subr.bf16.mxu0 0
    %727 = vmatpush1.bf16.msra.mxu0 0
    %728 = vmatprep.mubr.bf16.mxu0 0
    %729 = vmatmul.mubr.bf16.gmra.mrb[0].mxu0 %v654
    %v730 = vpop.f32.mrb[0].mxu0
    %v731 = vadd.f32 %v652, %v730
    %v732 = vpop.f32.mrb[0].mxu0
    %v733 = vadd.f32 %v653, %v732
    %v734 = vpop.f32.mrb[0].mxu0
    %v735 = vpop.f32.mrb[0].mxu0
    %736 = vdwg.mxu0
    %v737 = vxor.u32 %v690, 2147483648
    %v738 = vxor.u32 %v692, 2147483648
    %v739 = vxor.u32 %v731, 2147483648
    %v740 = vmul.f32 %v737, 1.442695
    %v741 = vpow.pop %v740
    %v742 = vmul.f32 %v738, 1.442695
    %v743 = vpow.pop %v742
    %v744 = vmul.f32 %v739, 1.442695
    %v745 = vpow.pop %v744
    %v746 = vadd.f32 %v741, 1.0
    %v747 = vadd.f32 %v743, 1.0
    %v748 = vadd.f32 %v745, 1.0
    %v749 = vrcp.pop %v746
    %v750 = vmul.f32 1.0, %v749
    %v751 = vrcp.pop %v747
    %v752 = vmul.f32 1.0, %v751
    %v753 = vrcp.pop %v748
    %v754 = vmul.f32 1.0, %v753
    %v755 = vtanh.pop %v733
    %v756 = vmul.f32 %v752, %v636
    %v757 = vmul.f32 %v750, %v755
    %v758 = vadd.f32 %v756, %v757
    %v759 = vtanh.pop %v758
    %v760 = vmul.f32 %v754, %v759
    %s761 = scalar_lea.vmem %s0, 32
    %v762 = vld [vmem:[%s761] sm:$0xff]
    %764 = vset.pattern.permute.xlu0 0
    %765 = vperm.xlu0 %764, %v762
    %v766 = vpop.permute.xlu0 %765
    %v768 = vmul.f32 %v766, %v83
    %v769 = vmul.f32 %v766, %v87
    %v770 = vmul.f32 %v766, %v91
    %v771 = vmul.f32 %v766, %v95
    %v772 = vadd.f32 %v768, %v108
    %v773 = vadd.f32 %v769, %v112
    %v774 = vadd.f32 %v770, %v116
    %v775 = vadd.f32 %v771, %v120
    %v776 = vpack.c.bf16 %v760, %v760
    %777 = vmatprep.subr.bf16.mxu0 %v226
    %778 = vmatpush1.bf16.msra.mxu0 %v225
    %779 = vmatprep.subr.bf16.mxu0 %v230
    %780 = vmatpush1.bf16.msra.mxu0 %v229
    %781 = vmatprep.subr.bf16.mxu0 %v234
    %782 = vmatpush1.bf16.msra.mxu0 %v233
    %783 = vmatprep.subr.bf16.mxu0 %v238
    %784 = vmatpush1.bf16.msra.mxu0 %v237
    %785 = vmatprep.subr.bf16.mxu0 %v242
    %786 = vmatpush1.bf16.msra.mxu0 %v241
    %787 = vmatprep.subr.bf16.mxu0 %v246
    %788 = vmatpush1.bf16.msra.mxu0 %v245
    %789 = vmatprep.subr.bf16.mxu0 %v250
    %790 = vmatpush1.bf16.msra.mxu0 %v249
    %791 = vmatprep.subr.bf16.mxu0 %v254
    %792 = vmatpush1.bf16.msra.mxu0 %v253
    %793 = vmatprep.subr.bf16.mxu0 0
    %794 = vmatpush1.bf16.msra.mxu0 0
    %795 = vmatprep.subr.bf16.mxu0 0
    %796 = vmatpush1.bf16.msra.mxu0 0
    %797 = vmatprep.subr.bf16.mxu0 0
    %798 = vmatpush1.bf16.msra.mxu0 0
    %799 = vmatprep.subr.bf16.mxu0 0
    %800 = vmatpush1.bf16.msra.mxu0 0
    %801 = vmatprep.subr.bf16.mxu0 0
    %802 = vmatpush1.bf16.msra.mxu0 0
    %803 = vmatprep.subr.bf16.mxu0 0
    %804 = vmatpush1.bf16.msra.mxu0 0
    %805 = vmatprep.subr.bf16.mxu0 0
    %806 = vmatpush1.bf16.msra.mxu0 0
    %807 = vmatprep.subr.bf16.mxu0 0
    %808 = vmatpush1.bf16.msra.mxu0 0
    %809 = vmatprep.mubr.bf16.mxu0 0
    %810 = vmatmul.mubr.bf16.gmra.mrb[0].mxu0 %v776
    %v811 = vpop.f32.mrb[0].mxu0
    %v812 = vadd.f32 %v772, %v811
    %v813 = vpop.f32.mrb[0].mxu0
    %v814 = vadd.f32 %v773, %v813
    %v815 = vpop.f32.mrb[0].mxu0
    %v816 = vpop.f32.mrb[0].mxu0
    %817 = vdwg.mxu0
    %818 = vmatprep.subr.bf16.mxu0 %v228
    %819 = vmatpush1.bf16.msra.mxu0 %v227
    %820 = vmatprep.subr.bf16.mxu0 %v232
    %821 = vmatpush1.bf16.msra.mxu0 %v231
    %822 = vmatprep.subr.bf16.mxu0 %v236
    %823 = vmatpush1.bf16.msra.mxu0 %v235
    %824 = vmatprep.subr.bf16.mxu0 %v240
    %825 = vmatpush1.bf16.msra.mxu0 %v239
    %826 = vmatprep.subr.bf16.mxu0 %v244
    %827 = vmatpush1.bf16.msra.mxu0 %v243
    %828 = vmatprep.subr.bf16.mxu0 %v248
    %829 = vmatpush1.bf16.msra.mxu0 %v247
    %830 = vmatprep.subr.bf16.mxu0 %v252
    %831 = vmatpush1.bf16.msra.mxu0 %v251
    %832 = vmatprep.subr.bf16.mxu0 %v256
    %833 = vmatpush1.bf16.msra.mxu0 %v255
    %834 = vmatprep.subr.bf16.mxu0 0
    %835 = vmatpush1.bf16.msra.mxu0 0
    %836 = vmatprep.subr.bf16.mxu0 0
    %837 = vmatpush1.bf16.msra.mxu0 0
    %838 = vmatprep.subr.bf16.mxu0 0
    %839 = vmatpush1.bf16.msra.mxu0 0
    %840 = vmatprep.subr.bf16.mxu0 0
    %841 = vmatpush1.bf16.msra.mxu0 0
    %842 = vmatprep.subr.bf16.mxu0 0
    %843 = vmatpush1.bf16.msra.mxu0 0
    %844 = vmatprep.subr.bf16.mxu0 0
    %845 = vmatpush1.bf16.msra.mxu0 0
    %846 = vmatprep.subr.bf16.mxu0 0
    %847 = vmatpush1.bf16.msra.mxu0 0
    %848 = vmatprep.subr.bf16.mxu0 0
    %849 = vmatpush1.bf16.msra.mxu0 0
    %850 = vmatprep.mubr.bf16.mxu0 0
    %851 = vmatmul.mubr.bf16.gmra.mrb[0].mxu0 %v776
    %v852 = vpop.f32.mrb[0].mxu0
    %v853 = vadd.f32 %v774, %v852
    %v854 = vpop.f32.mrb[0].mxu0
    %v855 = vadd.f32 %v775, %v854
    %v856 = vpop.f32.mrb[0].mxu0
    %v857 = vpop.f32.mrb[0].mxu0
    %858 = vdwg.mxu0
    %v859 = vxor.u32 %v812, 2147483648
    %v860 = vxor.u32 %v814, 2147483648
    %v861 = vxor.u32 %v853, 2147483648
    %v862 = vmul.f32 %v859, 1.442695
    %v863 = vpow.pop %v862
    %v864 = vmul.f32 %v860, 1.442695
    %v865 = vpow.pop %v864
    %v866 = vmul.f32 %v861, 1.442695
    %v867 = vpow.pop %v866
    %v868 = vadd.f32 %v863, 1.0
    %v869 = vadd.f32 %v865, 1.0
    %v870 = vadd.f32 %v867, 1.0
    %v871 = vrcp.pop %v868
    %v872 = vmul.f32 1.0, %v871
    %v873 = vrcp.pop %v869
    %v874 = vmul.f32 1.0, %v873
    %v875 = vrcp.pop %v870
    %v876 = vmul.f32 1.0, %v875
    %v877 = vtanh.pop %v855
    %v878 = vmul.f32 %v874, %v758
    %v879 = vmul.f32 %v872, %v877
    %v880 = vadd.f32 %v878, %v879
    %v881 = vtanh.pop %v880
    %v882 = vmul.f32 %v876, %v881
    %s883 = scalar_lea.vmem %s0, 40
    %v884 = vld [vmem:[%s883] sm:$0xff]
    %886 = vset.pattern.permute.xlu0 0
    %887 = vperm.xlu0 %886, %v884
    %v888 = vpop.permute.xlu0 %887
    %v890 = vmul.f32 %v888, %v83
    %v891 = vmul.f32 %v888, %v87
    %v892 = vmul.f32 %v888, %v91
    %v893 = vmul.f32 %v888, %v95
    %v894 = vadd.f32 %v890, %v108
    %v895 = vadd.f32 %v891, %v112
    %v896 = vadd.f32 %v892, %v116
    %v897 = vadd.f32 %v893, %v120
    %v898 = vpack.c.bf16 %v882, %v882
    %899 = vmatprep.subr.bf16.mxu0 %v226
    %900 = vmatpush1.bf16.msra.mxu0 %v225
    %901 = vmatprep.subr.bf16.mxu0 %v230
    %902 = vmatpush1.bf16.msra.mxu0 %v229
    %903 = vmatprep.subr.bf16.mxu0 %v234
    %904 = vmatpush1.bf16.msra.mxu0 %v233
    %905 = vmatprep.subr.bf16.mxu0 %v238
    %906 = vmatpush1.bf16.msra.mxu0 %v237
    %907 = vmatprep.subr.bf16.mxu0 %v242
    %908 = vmatpush1.bf16.msra.mxu0 %v241
    %909 = vmatprep.subr.bf16.mxu0 %v246
    %910 = vmatpush1.bf16.msra.mxu0 %v245
    %911 = vmatprep.subr.bf16.mxu0 %v250
    %912 = vmatpush1.bf16.msra.mxu0 %v249
    %913 = vmatprep.subr.bf16.mxu0 %v254
    %914 = vmatpush1.bf16.msra.mxu0 %v253
    %915 = vmatprep.subr.bf16.mxu0 0
    %916 = vmatpush1.bf16.msra.mxu0 0
    %917 = vmatprep.subr.bf16.mxu0 0
    %918 = vmatpush1.bf16.msra.mxu0 0
    %919 = vmatprep.subr.bf16.mxu0 0
    %920 = vmatpush1.bf16.msra.mxu0 0
    %921 = vmatprep.subr.bf16.mxu0 0
    %922 = vmatpush1.bf16.msra.mxu0 0
    %923 = vmatprep.subr.bf16.mxu0 0
    %924 = vmatpush1.bf16.msra.mxu0 0
    %925 = vmatprep.subr.bf16.mxu0 0
    %926 = vmatpush1.bf16.msra.mxu0 0
    %927 = vmatprep.subr.bf16.mxu0 0
    %928 = vmatpush1.bf16.msra.mxu0 0
    %929 = vmatprep.subr.bf16.mxu0 0
    %930 = vmatpush1.bf16.msra.mxu0 0
    %931 = vmatprep.mubr.bf16.mxu0 0
    %932 = vmatmul.mubr.bf16.gmra.mrb[0].mxu0 %v898
    %v933 = vpop.f32.mrb[0].mxu0
    %v934 = vadd.f32 %v894, %v933
    %v935 = vpop.f32.mrb[0].mxu0
    %v936 = vadd.f32 %v895, %v935
    %v937 = vpop.f32.mrb[0].mxu0
    %v938 = vpop.f32.mrb[0].mxu0
    %939 = vdwg.mxu0
    %940 = vmatprep.subr.bf16.mxu0 %v228
    %941 = vmatpush1.bf16.msra.mxu0 %v227
    %942 = vmatprep.subr.bf16.mxu0 %v232
    %943 = vmatpush1.bf16.msra.mxu0 %v231
    %944 = vmatprep.subr.bf16.mxu0 %v236
    %945 = vmatpush1.bf16.msra.mxu0 %v235
    %946 = vmatprep.subr.bf16.mxu0 %v240
    %947 = vmatpush1.bf16.msra.mxu0 %v239
    %948 = vmatprep.subr.bf16.mxu0 %v244
    %949 = vmatpush1.bf16.msra.mxu0 %v243
    %950 = vmatprep.subr.bf16.mxu0 %v248
    %951 = vmatpush1.bf16.msra.mxu0 %v247
    %952 = vmatprep.subr.bf16.mxu0 %v252
    %953 = vmatpush1.bf16.msra.mxu0 %v251
    %954 = vmatprep.subr.bf16.mxu0 %v256
    %955 = vmatpush1.bf16.msra.mxu0 %v255
    %956 = vmatprep.subr.bf16.mxu0 0
    %957 = vmatpush1.bf16.msra.mxu0 0
    %958 = vmatprep.subr.bf16.mxu0 0
    %959 = vmatpush1.bf16.msra.mxu0 0
    %960 = vmatprep.subr.bf16.mxu0 0
    %961 = vmatpush1.bf16.msra.mxu0 0
    %962 = vmatprep.subr.bf16.mxu0 0
    %963 = vmatpush1.bf16.msra.mxu0 0
    %964 = vmatprep.subr.bf16.mxu0 0
    %965 = vmatpush1.bf16.msra.mxu0 0
    %966 = vmatprep.subr.bf16.mxu0 0
    %967 = vmatpush1.bf16.msra.mxu0 0
    %968 = vmatprep.subr.bf16.mxu0 0
    %969 = vmatpush1.bf16.msra.mxu0 0
    %970 = vmatprep.subr.bf16.mxu0 0
    %971 = vmatpush1.bf16.msra.mxu0 0
    %972 = vmatprep.mubr.bf16.mxu0 0
    %973 = vmatmul.mubr.bf16.gmra.mrb[0].mxu0 %v898
    %v974 = vpop.f32.mrb[0].mxu0
    %v975 = vadd.f32 %v896, %v974
    %v976 = vpop.f32.mrb[0].mxu0
    %v977 = vadd.f32 %v897, %v976
    %v978 = vpop.f32.mrb[0].mxu0
    %v979 = vpop.f32.mrb[0].mxu0
    %980 = vdwg.mxu0
    %v981 = vxor.u32 %v934, 2147483648
    %v982 = vxor.u32 %v936, 2147483648
    %v983 = vxor.u32 %v975, 2147483648
    %v984 = vmul.f32 %v981, 1.442695
    %v985 = vpow.pop %v984
    %v986 = vmul.f32 %v982, 1.442695
    %v987 = vpow.pop %v986
    %v988 = vmul.f32 %v983, 1.442695
    %v989 = vpow.pop %v988
    %v990 = vadd.f32 %v985, 1.0
    %v991 = vadd.f32 %v987, 1.0
    %v992 = vadd.f32 %v989, 1.0
    %v993 = vrcp.pop %v990
    %v994 = vmul.f32 1.0, %v993
    %v995 = vrcp.pop %v991
    %v996 = vmul.f32 1.0, %v995
    %v997 = vrcp.pop %v992
    %v998 = vmul.f32 1.0, %v997
    %v999 = vtanh.pop %v977
    %v1000 = vmul.f32 %v996, %v880
    %v1001 = vmul.f32 %v994, %v999
    %v1002 = vadd.f32 %v1000, %v1001
    %v1003 = vtanh.pop %v1002
    %v1004 = vmul.f32 %v998, %v1003
    %s1005 = scalar_lea.vmem %s0, 48
    %v1006 = vld [vmem:[%s1005] sm:$0xff]
    %1008 = vset.pattern.permute.xlu0 0
    %1009 = vperm.xlu0 %1008, %v1006
    %v1010 = vpop.permute.xlu0 %1009
    %v1012 = vmul.f32 %v1010, %v83
    %v1013 = vmul.f32 %v1010, %v87
    %v1014 = vmul.f32 %v1010, %v91
    %v1015 = vmul.f32 %v1010, %v95
    %v1016 = vadd.f32 %v1012, %v108
    %v1017 = vadd.f32 %v1013, %v112
    %v1018 = vadd.f32 %v1014, %v116
    %v1019 = vadd.f32 %v1015, %v120
    %v1020 = vpack.c.bf16 %v1004, %v1004
    %1021 = vmatprep.subr.bf16.mxu0 %v226
    %1022 = vmatpush1.bf16.msra.mxu0 %v225
    %1023 = vmatprep.subr.bf16.mxu0 %v230
    %1024 = vmatpush1.bf16.msra.mxu0 %v229
    %1025 = vmatprep.subr.bf16.mxu0 %v234
    %1026 = vmatpush1.bf16.msra.mxu0 %v233
    %1027 = vmatprep.subr.bf16.mxu0 %v238
    %1028 = vmatpush1.bf16.msra.mxu0 %v237
    %1029 = vmatprep.subr.bf16.mxu0 %v242
    %1030 = vmatpush1.bf16.msra.mxu0 %v241
    %1031 = vmatprep.subr.bf16.mxu0 %v246
    %1032 = vmatpush1.bf16.msra.mxu0 %v245
    %1033 = vmatprep.subr.bf16.mxu0 %v250
    %1034 = vmatpush1.bf16.msra.mxu0 %v249
    %1035 = vmatprep.subr.bf16.mxu0 %v254
    %1036 = vmatpush1.bf16.msra.mxu0 %v253
    %1037 = vmatprep.subr.bf16.mxu0 0
    %1038 = vmatpush1.bf16.msra.mxu0 0
    %1039 = vmatprep.subr.bf16.mxu0 0
    %1040 = vmatpush1.bf16.msra.mxu0 0
    %1041 = vmatprep.subr.bf16.mxu0 0
    %1042 = vmatpush1.bf16.msra.mxu0 0
    %1043 = vmatprep.subr.bf16.mxu0 0
    %1044 = vmatpush1.bf16.msra.mxu0 0
    %1045 = vmatprep.subr.bf16.mxu0 0
    %1046 = vmatpush1.bf16.msra.mxu0 0
    %1047 = vmatprep.subr.bf16.mxu0 0
    %1048 = vmatpush1.bf16.msra.mxu0 0
    %1049 = vmatprep.subr.bf16.mxu0 0
    %1050 = vmatpush1.bf16.msra.mxu0 0
    %1051 = vmatprep.subr.bf16.mxu0 0
    %1052 = vmatpush1.bf16.msra.mxu0 0
    %1053 = vmatprep.mubr.bf16.mxu0 0
    %1054 = vmatmul.mubr.bf16.gmra.mrb[0].mxu0 %v1020
    %v1055 = vpop.f32.mrb[0].mxu0
    %v1056 = vadd.f32 %v1016, %v1055
    %v1057 = vpop.f32.mrb[0].mxu0
    %v1058 = vadd.f32 %v1017, %v1057
    %v1059 = vpop.f32.mrb[0].mxu0
    %v1060 = vpop.f32.mrb[0].mxu0
    %1061 = vdwg.mxu0
    %1062 = vmatprep.subr.bf16.mxu0 %v228
    %1063 = vmatpush1.bf16.msra.mxu0 %v227
    %1064 = vmatprep.subr.bf16.mxu0 %v232
    %1065 = vmatpush1.bf16.msra.mxu0 %v231
    %1066 = vmatprep.subr.bf16.mxu0 %v236
    %1067 = vmatpush1.bf16.msra.mxu0 %v235
    %1068 = vmatprep.subr.bf16.mxu0 %v240
    %1069 = vmatpush1.bf16.msra.mxu0 %v239
    %1070 = vmatprep.subr.bf16.mxu0 %v244
    %1071 = vmatpush1.bf16.msra.mxu0 %v243
    %1072 = vmatprep.subr.bf16.mxu0 %v248
    %1073 = vmatpush1.bf16.msra.mxu0 %v247
    %1074 = vmatprep.subr.bf16.mxu0 %v252
    %1075 = vmatpush1.bf16.msra.mxu0 %v251
    %1076 = vmatprep.subr.bf16.mxu0 %v256
    %1077 = vmatpush1.bf16.msra.mxu0 %v255
    %1078 = vmatprep.subr.bf16.mxu0 0
    %1079 = vmatpush1.bf16.msra.mxu0 0
    %1080 = vmatprep.subr.bf16.mxu0 0
    %1081 = vmatpush1.bf16.msra.mxu0 0
    %1082 = vmatprep.subr.bf16.mxu0 0
    %1083 = vmatpush1.bf16.msra.mxu0 0
    %1084 = vmatprep.subr.bf16.mxu0 0
    %1085 = vmatpush1.bf16.msra.mxu0 0
    %1086 = vmatprep.subr.bf16.mxu0 0
    %1087 = vmatpush1.bf16.msra.mxu0 0
    %1088 = vmatprep.subr.bf16.mxu0 0
    %1089 = vmatpush1.bf16.msra.mxu0 0
    %1090 = vmatprep.subr.bf16.mxu0 0
    %1091 = vmatpush1.bf16.msra.mxu0 0
    %1092 = vmatprep.subr.bf16.mxu0 0
    %1093 = vmatpush1.bf16.msra.mxu0 0
    %1094 = vmatprep.mubr.bf16.mxu0 0
    %1095 = vmatmul.mubr.bf16.gmra.mrb[0].mxu0 %v1020
    %v1096 = vpop.f32.mrb[0].mxu0
    %v1097 = vadd.f32 %v1018, %v1096
    %v1098 = vpop.f32.mrb[0].mxu0
    %v1099 = vadd.f32 %v1019, %v1098
    %v1100 = vpop.f32.mrb[0].mxu0
    %v1101 = vpop.f32.mrb[0].mxu0
    %1102 = vdwg.mxu0
    %v1103 = vxor.u32 %v1056, 2147483648
    %v1104 = vxor.u32 %v1058, 2147483648
    %v1105 = vxor.u32 %v1097, 2147483648
    %v1106 = vmul.f32 %v1103, 1.442695
    %v1107 = vpow.pop %v1106
    %v1108 = vmul.f32 %v1104, 1.442695
    %v1109 = vpow.pop %v1108
    %v1110 = vmul.f32 %v1105, 1.442695
    %v1111 = vpow.pop %v1110
    %v1112 = vadd.f32 %v1107, 1.0
    %v1113 = vadd.f32 %v1109, 1.0
    %v1114 = vadd.f32 %v1111, 1.0
    %v1115 = vrcp.pop %v1112
    %v1116 = vmul.f32 1.0, %v1115
    %v1117 = vrcp.pop %v1113
    %v1118 = vmul.f32 1.0, %v1117
    %v1119 = vrcp.pop %v1114
    %v1120 = vmul.f32 1.0, %v1119
    %v1121 = vtanh.pop %v1099
    %v1122 = vmul.f32 %v1118, %v1002
    %v1123 = vmul.f32 %v1116, %v1121
    %v1124 = vadd.f32 %v1122, %v1123
    %v1125 = vtanh.pop %v1124
    %v1126 = vmul.f32 %v1120, %v1125
    %s1127 = scalar_lea.vmem %s0, 56
    %v1128 = vld [vmem:[%s1127] sm:$0xff]
    %1130 = vset.pattern.permute.xlu0 0
    %1131 = vperm.xlu0 %1130, %v1128
    %v1132 = vpop.permute.xlu0 %1131
    %v1134 = vmul.f32 %v1132, %v83
    %v1135 = vmul.f32 %v1132, %v87
    %v1136 = vmul.f32 %v1132, %v91
    %v1137 = vmul.f32 %v1132, %v95
    %v1138 = vadd.f32 %v1134, %v108
    %v1139 = vadd.f32 %v1135, %v112
    %v1140 = vadd.f32 %v1136, %v116
    %v1141 = vadd.f32 %v1137, %v120
    %v1142 = vpack.c.bf16 %v1126, %v1126
    %1143 = vmatprep.subr.bf16.mxu0 %v226
    %1144 = vmatpush1.bf16.msra.mxu0 %v225
    %1145 = vmatprep.subr.bf16.mxu0 %v230
    %1146 = vmatpush1.bf16.msra.mxu0 %v229
    %1147 = vmatprep.subr.bf16.mxu0 %v234
    %1148 = vmatpush1.bf16.msra.mxu0 %v233
    %1149 = vmatprep.subr.bf16.mxu0 %v238
    %1150 = vmatpush1.bf16.msra.mxu0 %v237
    %1151 = vmatprep.subr.bf16.mxu0 %v242
    %1152 = vmatpush1.bf16.msra.mxu0 %v241
    %1153 = vmatprep.subr.bf16.mxu0 %v246
    %1154 = vmatpush1.bf16.msra.mxu0 %v245
    %1155 = vmatprep.subr.bf16.mxu0 %v250
    %1156 = vmatpush1.bf16.msra.mxu0 %v249
    %1157 = vmatprep.subr.bf16.mxu0 %v254
    %1158 = vmatpush1.bf16.msra.mxu0 %v253
    %1159 = vmatprep.subr.bf16.mxu0 0
    %1160 = vmatpush1.bf16.msra.mxu0 0
    %1161 = vmatprep.subr.bf16.mxu0 0
    %1162 = vmatpush1.bf16.msra.mxu0 0
    %1163 = vmatprep.subr.bf16.mxu0 0
    %1164 = vmatpush1.bf16.msra.mxu0 0
    %1165 = vmatprep.subr.bf16.mxu0 0
    %1166 = vmatpush1.bf16.msra.mxu0 0
    %1167 = vmatprep.subr.bf16.mxu0 0
    %1168 = vmatpush1.bf16.msra.mxu0 0
    %1169 = vmatprep.subr.bf16.mxu0 0
    %1170 = vmatpush1.bf16.msra.mxu0 0
    %1171 = vmatprep.subr.bf16.mxu0 0
    %1172 = vmatpush1.bf16.msra.mxu0 0
    %1173 = vmatprep.subr.bf16.mxu0 0
    %1174 = vmatpush1.bf16.msra.mxu0 0
    %1175 = vmatprep.mubr.bf16.mxu0 0
    %1176 = vmatmul.mubr.bf16.gmra.mrb[0].mxu0 %v1142
    %v1177 = vpop.f32.mrb[0].mxu0
    %v1178 = vadd.f32 %v1138, %v1177
    %v1179 = vpop.f32.mrb[0].mxu0
    %v1180 = vadd.f32 %v1139, %v1179
    %v1181 = vpop.f32.mrb[0].mxu0
    %v1182 = vpop.f32.mrb[0].mxu0
    %1183 = vdwg.mxu0
    %1184 = vmatprep.subr.bf16.mxu0 %v228
    %1185 = vmatpush1.bf16.msra.mxu0 %v227
    %1186 = vmatprep.subr.bf16.mxu0 %v232
    %1187 = vmatpush1.bf16.msra.mxu0 %v231
    %1188 = vmatprep.subr.bf16.mxu0 %v236
    %1189 = vmatpush1.bf16.msra.mxu0 %v235
    %1190 = vmatprep.subr.bf16.mxu0 %v240
    %1191 = vmatpush1.bf16.msra.mxu0 %v239
    %1192 = vmatprep.subr.bf16.mxu0 %v244
    %1193 = vmatpush1.bf16.msra.mxu0 %v243
    %1194 = vmatprep.subr.bf16.mxu0 %v248
    %1195 = vmatpush1.bf16.msra.mxu0 %v247
    %1196 = vmatprep.subr.bf16.mxu0 %v252
    %1197 = vmatpush1.bf16.msra.mxu0 %v251
    %1198 = vmatprep.subr.bf16.mxu0 %v256
    %1199 = vmatpush1.bf16.msra.mxu0 %v255
    %1200 = vmatprep.subr.bf16.mxu0 0
    %1201 = vmatpush1.bf16.msra.mxu0 0
    %1202 = vmatprep.subr.bf16.mxu0 0
    %1203 = vmatpush1.bf16.msra.mxu0 0
    %1204 = vmatprep.subr.bf16.mxu0 0
    %1205 = vmatpush1.bf16.msra.mxu0 0
    %1206 = vmatprep.subr.bf16.mxu0 0
    %1207 = vmatpush1.bf16.msra.mxu0 0
    %1208 = vmatprep.subr.bf16.mxu0 0
    %1209 = vmatpush1.bf16.msra.mxu0 0
    %1210 = vmatprep.subr.bf16.mxu0 0
    %1211 = vmatpush1.bf16.msra.mxu0 0
    %1212 = vmatprep.subr.bf16.mxu0 0
    %1213 = vmatpush1.bf16.msra.mxu0 0
    %1214 = vmatprep.subr.bf16.mxu0 0
    %1215 = vmatpush1.bf16.msra.mxu0 0
    %1216 = vmatprep.mubr.bf16.mxu0 0
    %1217 = vmatmul.mubr.bf16.gmra.mrb[0].mxu0 %v1142
    %v1218 = vpop.f32.mrb[0].mxu0
    %v1219 = vadd.f32 %v1140, %v1218
    %v1220 = vpop.f32.mrb[0].mxu0
    %v1221 = vadd.f32 %v1141, %v1220
    %v1222 = vpop.f32.mrb[0].mxu0
    %v1223 = vpop.f32.mrb[0].mxu0
    %1224 = vdwg.mxu0
    %v1225 = vxor.u32 %v1178, 2147483648
    %v1226 = vxor.u32 %v1180, 2147483648
    %v1227 = vxor.u32 %v1219, 2147483648
    %v1228 = vmul.f32 %v1225, 1.442695
    %v1229 = vpow.pop %v1228
    %v1230 = vmul.f32 %v1226, 1.442695
    %v1231 = vpow.pop %v1230
    %v1232 = vmul.f32 %v1227, 1.442695
    %v1233 = vpow.pop %v1232
    %v1234 = vadd.f32 %v1229, 1.0
    %v1235 = vadd.f32 %v1231, 1.0
    %v1236 = vadd.f32 %v1233, 1.0
    %v1237 = vrcp.pop %v1234
    %v1238 = vmul.f32 1.0, %v1237
    %v1239 = vrcp.pop %v1235
    %v1240 = vmul.f32 1.0, %v1239
    %v1241 = vrcp.pop %v1236
    %v1242 = vmul.f32 1.0, %v1241
    %v1243 = vtanh.pop %v1221
    %v1244 = vmul.f32 %v1240, %v1124
    %v1245 = vmul.f32 %v1238, %v1243
    %v1246 = vadd.f32 %v1244, %v1245
    %v1247 = vtanh.pop %v1246
    %v1248 = vmul.f32 %v1242, %v1247
    %v1249 = vld [vmem:[%s4] sm:$0x1]
    %v1251 = vlaneseq
    %v1252 = vshrl.u32 %v1251, 7
    %v1253 = vsub.s32 0, %v1252
    %v1254 = vrot.slane %v1249, %v1253
    %v1256 = vmul.f32 %v1248, %v1254
    %1257 = vadd.xlane.f32.xlu0 %v1256
    %v1258 = vpop.xlane.xlu0 %1257
    %s1259 = sld [smem:[#allocation2]]
    %v1260 = vstv %s1259
    %v1261 = vadd.f32 %v1258, %v1260
    %1262 = vst [vmem:[%s6] sm:$0xff] %v1261
    // Predicated region
    $region30: #{stock_predictor_forward.1} parent=1 // pred_check
      _
    $region31: #{stock_predictor_forward.1} parent=1 // pred_check_branch
      %1264 = sbr.rel (0) target = $region33
    $region32: #{stock_predictor_forward.1} parent=1 // pred_region
      _
    $region33: #{stock_predictor_forward.1} parent=1 // pred_fallthru
      _
    // Predicated region
    $region34: #{stock_predictor_forward.1} parent=1 // pred_check
      _
    $region35: #{stock_predictor_forward.1} parent=1 // pred_check_branch
      %1266 = sbr.rel (0) target = $region37
    $region36: #{stock_predictor_forward.1} parent=1 // pred_region
      _
    $region37: #{stock_predictor_forward.1} parent=1 // pred_fallthru
      _
    %1267 = vsyncpa [#allocation4], 1

</llo_original>
